<compile_context>
chip_gen: v7x
topology: tpu7x:2x2x1
jax: 0.10.0
libtpu: 0.0.40
codegen_flags: <defaults>
</compile_context>

<pallas_src>
import functools

import jax
import jax.numpy as jnp
from jax.experimental import pallas as pl
from jax.experimental.pallas import tpu as pltpu


# ----------------------------- Pallas kernel ------------------------------- #

def _fused_forward_kernel(n_layers, x_ref, *refs):
    """Fully fused RNN (tanh) stack + Linear head, everything VMEM-resident.

    refs layout:
      refs[3l + 0] : W_ih^T for layer l, shape (in_dim_l, H)
      refs[3l + 1] : W_hh^T for layer l, shape (H, H)
      refs[3l + 2] : (b_ih + b_hh) for layer l, shape (1, H)
      refs[3L + 0] : fc weight (H, out)
      refs[3L + 1] : fc bias   (1, out)
      refs[3L + 2] : out_ref   (batch*seq, out)
      refs[3L + 3] : hn_ref    (n_layers, batch, H)
    """
    weight_refs = refs[:3 * n_layers]
    wfc_ref = refs[3 * n_layers]
    bfc_ref = refs[3 * n_layers + 1]
    out_ref = refs[3 * n_layers + 2]
    hn_ref = refs[3 * n_layers + 3]

    batch, seq, in_dim = x_ref.shape
    hidden = wfc_ref.shape[0]

    # Batch-major flatten: row index = b*seq + t  (matches out.view(-1, H)).
    cur = x_ref[...].reshape(batch * seq, in_dim)

    for l in range(n_layers):
        wih = weight_refs[3 * l][...]          # (in_dim_l, H)
        whh = weight_refs[3 * l + 1][...]      # (H, H)
        b = weight_refs[3 * l + 2][...]        # (1, H), read once per layer

        # Hoisted input projection + bias: one matmul for all timesteps.
        pre = jnp.dot(cur, wih, preferred_element_type=jnp.float32) + b
        pre = pre.reshape(batch, seq, hidden)

        h = jnp.zeros((batch, hidden), jnp.float32)
        outs = []
        for t in range(seq):                   # static unroll (seq is small)
            h = jnp.tanh(
                pre[:, t, :]
                + jnp.dot(h, whh, preferred_element_type=jnp.float32))
            outs.append(h)

        hn_ref[l] = h.astype(hn_ref.dtype)     # final hidden state of layer l

        # Re-pack to (batch, seq, H) batch-major and flatten for next layer/fc.
        cur = jnp.stack(outs, axis=1).reshape(batch * seq, hidden)

    out_ref[...] = (jnp.dot(cur, wfc_ref[...], preferred_element_type=jnp.float32)
                    + bfc_ref[...]).astype(out_ref.dtype)


# ------------------------------ JAX wrapper --------------------------------- #

def _full_spec(shape):
    n = len(shape)
    return pl.BlockSpec(shape, lambda i, _n=n: (0,) * _n)


@functools.partial(jax.jit, static_argnames=("hidden_dim", "n_layers"))
def model_forward(x, params, hidden_dim, n_layers):
    """Equivalent of Model.forward: returns (out, hidden).

    x      : (batch, seq, input_size)
    out    : (batch*seq, output_size)
    hidden : (n_layers, batch, hidden_dim)
    """
    batch, seq, _ = x.shape
    output_size = params["fc_w"].shape[1]

    args = [x]
    for l in range(n_layers):
        args += [params[f"wih{l}"], params[f"whh{l}"], params[f"b{l}"]]
    args += [params["fc_w"], params["fc_b"]]

    out_shapes = (
        jax.ShapeDtypeStruct((batch * seq, output_size), jnp.float32),
        jax.ShapeDtypeStruct((n_layers, batch, hidden_dim), jnp.float32),
    )
    out_specs = (
        _full_spec((batch * seq, output_size)),
        _full_spec((n_layers, batch, hidden_dim)),
    )

    out, hidden = pl.pallas_call(
        functools.partial(_fused_forward_kernel, n_layers),
        out_shape=out_shapes,
        grid=(1,),
        in_specs=[_full_spec(a.shape) for a in args],
        out_specs=out_specs,
        compiler_params=pltpu.CompilerParams(
            dimension_semantics=("arbitrary",)),
    )(*args)
    return out, hidden


# ------------------------------ init / reference ---------------------------- #

def init_params(key, input_size, output_size, hidden_dim, n_layers):
    """Deterministic init mirroring PyTorch's U(-1/sqrt(H), 1/sqrt(H))."""
    params = {}
    bound = 1.0 / jnp.sqrt(jnp.float32(hidden_dim))
    for l in range(n_layers):
        in_dim = input_size if l == 0 else hidden_dim
        key, k1, k2, k3, k4 = jax.random.split(key, 5)
        # stored transposed relative to PyTorch (in_dim, hidden): kernel does x @ W
        params[f"wih{l}"] = jax.random.uniform(k1, (in_dim, hidden_dim),
                                               jnp.float32, -bound, bound)
        params[f"whh{l}"] = jax.random.uniform(k2, (hidden_dim, hidden_dim),
                                               jnp.float32, -bound, bound)
        b_ih = jax.random.uniform(k3, (hidden_dim,), jnp.float32, -bound, bound)
        b_hh = jax.random.uniform(k4, (hidden_dim,), jnp.float32, -bound, bound)
        params[f"b{l}"] = (b_ih + b_hh).reshape(1, hidden_dim)
    key, k5, k6 = jax.random.split(key, 3)
    params["fc_w"] = jax.random.uniform(k5, (hidden_dim, output_size),
                                        jnp.float32, -bound, bound)
    params["fc_b"] = jax.random.uniform(k6, (output_size,),
                                        jnp.float32, -bound, bound).reshape(1, -1)
    return params


def reference_forward(x, params, hidden_dim, n_layers):
    """Pure-JAX reference mirroring PyTorch nn.RNN + Linear semantics."""
    batch, seq, _ = x.shape
    inp = x
    finals = []
    for l in range(n_layers):
        wih, whh, b = params[f"wih{l}"], params[f"whh{l}"], params[f"b{l}"]
        h = jnp.zeros((batch, hidden_dim), jnp.float32)
        outs = []
        for t in range(seq):
            h = jnp.tanh(inp[:, t, :] @ wih + h @ whh + b)
            outs.append(h)
        inp = jnp.stack(outs, axis=1)
        finals.append(h)
    out = inp.reshape(batch * seq, hidden_dim) @ params["fc_w"] + params["fc_b"]
    return out, jnp.stack(finals, axis=0)


# ---------------------------------- main ------------------------------------ #

if __name__ == "__main__":
    # small shapes consistent with the char-RNN style module
    batch, seq = 3, 8              # batch_size = len(text) = 3
    input_size = 16                # one-hot vocab size
    hidden_dim = 32
    output_size = 16
    n_layers = 2

    key = jax.random.PRNGKey(0)
    key, kx = jax.random.split(key)
    x = jax.random.normal(kx, (batch, seq, input_size), jnp.float32)

    params = init_params(key, input_size, output_size, hidden_dim, n_layers)

    out, hidden = model_forward(x, params, hidden_dim, n_layers)
    out, hidden = jax.block_until_ready((out, hidden))

    ref_out, ref_hidden = reference_forward(x, params, hidden_dim, n_layers)
    assert out.shape == (batch * seq, output_size)
    assert hidden.shape == (n_layers, batch, hidden_dim)
    assert jnp.allclose(out, ref_out, atol=1e-5, rtol=1e-5)
    assert jnp.allclose(hidden, ref_hidden, atol=1e-5, rtol=1e-5)

    print("KERNEL_OK")
</pallas_src>

<mosaic_0001>
module attributes {stable_mosaic.version = 11 : i64} {
  func.func @_fused_forward_kernel(%arg0: i32, %arg1: memref<3x8x16xf32, #tpu.memory_space<vmem>>, %arg2: memref<16x32xf32, #tpu.memory_space<vmem>>, %arg3: memref<32x32xf32, #tpu.memory_space<vmem>>, %arg4: memref<1x32xf32, #tpu.memory_space<vmem>>, %arg5: memref<32x32xf32, #tpu.memory_space<vmem>>, %arg6: memref<32x32xf32, #tpu.memory_space<vmem>>, %arg7: memref<1x32xf32, #tpu.memory_space<vmem>>, %arg8: memref<32x16xf32, #tpu.memory_space<vmem>>, %arg9: memref<1x16xf32, #tpu.memory_space<vmem>>, %arg10: memref<24x16xf32, #tpu.memory_space<vmem>>, %arg11: memref<2x3x32xf32, #tpu.memory_space<vmem>>) attributes {dimension_semantics = [#tpu.dimension_semantics<arbitrary>], iteration_bounds = array<i64: 1>, scalar_prefetch = 0 : i64, scratch_operands = 0 : i64, tpu.core_type = #tpu.core_type<tc>, window_params = [{pipeline_mode = #tpu.pipeline_mode<synchronous>, transform_indices = @transform_0, window_bounds = array<i64: 3, 8, 16>}, {pipeline_mode = #tpu.pipeline_mode<synchronous>, transform_indices = @transform_1, window_bounds = array<i64: 16, 32>}, {pipeline_mode = #tpu.pipeline_mode<synchronous>, transform_indices = @transform_2, window_bounds = array<i64: 32, 32>}, {pipeline_mode = #tpu.pipeline_mode<synchronous>, transform_indices = @transform_3, window_bounds = array<i64: 1, 32>}, {pipeline_mode = #tpu.pipeline_mode<synchronous>, transform_indices = @transform_4, window_bounds = array<i64: 32, 32>}, {pipeline_mode = #tpu.pipeline_mode<synchronous>, transform_indices = @transform_5, window_bounds = array<i64: 32, 32>}, {pipeline_mode = #tpu.pipeline_mode<synchronous>, transform_indices = @transform_6, window_bounds = array<i64: 1, 32>}, {pipeline_mode = #tpu.pipeline_mode<synchronous>, transform_indices = @transform_7, window_bounds = array<i64: 32, 16>}, {pipeline_mode = #tpu.pipeline_mode<synchronous>, transform_indices = @transform_8, window_bounds = array<i64: 1, 16>}, {pipeline_mode = #tpu.pipeline_mode<synchronous>, transform_indices = @transform_9, window_bounds = array<i64: 24, 16>}, {pipeline_mode = #tpu.pipeline_mode<synchronous>, transform_indices = @transform_10, window_bounds = array<i64: 2, 3, 32>}]} {
    %c0 = arith.constant 0 : index
    %c0_0 = arith.constant 0 : index
    %c0_1 = arith.constant 0 : index
    %0 = vector.load %arg1[%c0, %c0_0, %c0_1] : memref<3x8x16xf32, #tpu.memory_space<vmem>>, vector<3x8x16xf32>
    %1 = vector.shape_cast %0 : vector<3x8x16xf32> to vector<24x16xf32>
    %c0_2 = arith.constant 0 : index
    %c0_3 = arith.constant 0 : index
    %2 = vector.load %arg2[%c0_2, %c0_3] : memref<16x32xf32, #tpu.memory_space<vmem>>, vector<16x32xf32>
    %c0_4 = arith.constant 0 : index
    %c0_5 = arith.constant 0 : index
    %3 = vector.load %arg3[%c0_4, %c0_5] : memref<32x32xf32, #tpu.memory_space<vmem>>, vector<32x32xf32>
    %c0_6 = arith.constant 0 : index
    %c0_7 = arith.constant 0 : index
    %4 = vector.load %arg4[%c0_6, %c0_7] : memref<1x32xf32, #tpu.memory_space<vmem>>, vector<1x32xf32>
    %cst = arith.constant dense<0.000000e+00> : vector<24x32xf32>
    %5 = tpu.matmul %1, %2, %cst {dimension_numbers = #tpu.dot_dimension_numbers<[1], [0], [0], [1], [0, 0, 1, 1], [], []>} : vector<24x16xf32>, vector<16x32xf32>, vector<24x32xf32> -> vector<24x32xf32>
    %6 = vector.broadcast %4 : vector<1x32xf32> to vector<24x32xf32>
    %7 = arith.addf %5, %6 : vector<24x32xf32>
    %8 = vector.shape_cast %7 : vector<24x32xf32> to vector<3x8x32xf32>
    %cst_8 = arith.constant 0.000000e+00 : f32
    %9 = vector.broadcast %cst_8 : f32 to vector<3x32xf32>
    %10 = vector.extract_strided_slice %8 {offsets = [0, 0, 0], sizes = [3, 1, 32], strides = [1, 1, 1]} : vector<3x8x32xf32> to vector<3x1x32xf32>
    %11 = vector.shape_cast %10 : vector<3x1x32xf32> to vector<3x32xf32>
    %cst_9 = arith.constant dense<0.000000e+00> : vector<3x32xf32>
    %12 = tpu.matmul %9, %3, %cst_9 {dimension_numbers = #tpu.dot_dimension_numbers<[1], [0], [0], [1], [0, 0, 1, 1], [], []>} : vector<3x32xf32>, vector<32x32xf32>, vector<3x32xf32> -> vector<3x32xf32>
    %13 = arith.addf %11, %12 : vector<3x32xf32>
    %14 = math.tanh %13 : vector<3x32xf32>
    %15 = vector.extract_strided_slice %8 {offsets = [0, 1, 0], sizes = [3, 1, 32], strides = [1, 1, 1]} : vector<3x8x32xf32> to vector<3x1x32xf32>
    %16 = vector.shape_cast %15 : vector<3x1x32xf32> to vector<3x32xf32>
    %cst_10 = arith.constant dense<0.000000e+00> : vector<3x32xf32>
    %17 = tpu.matmul %14, %3, %cst_10 {dimension_numbers = #tpu.dot_dimension_numbers<[1], [0], [0], [1], [0, 0, 1, 1], [], []>} : vector<3x32xf32>, vector<32x32xf32>, vector<3x32xf32> -> vector<3x32xf32>
    %18 = arith.addf %16, %17 : vector<3x32xf32>
    %19 = math.tanh %18 : vector<3x32xf32>
    %20 = vector.extract_strided_slice %8 {offsets = [0, 2, 0], sizes = [3, 1, 32], strides = [1, 1, 1]} : vector<3x8x32xf32> to vector<3x1x32xf32>
    %21 = vector.shape_cast %20 : vector<3x1x32xf32> to vector<3x32xf32>
    %cst_11 = arith.constant dense<0.000000e+00> : vector<3x32xf32>
    %22 = tpu.matmul %19, %3, %cst_11 {dimension_numbers = #tpu.dot_dimension_numbers<[1], [0], [0], [1], [0, 0, 1, 1], [], []>} : vector<3x32xf32>, vector<32x32xf32>, vector<3x32xf32> -> vector<3x32xf32>
    %23 = arith.addf %21, %22 : vector<3x32xf32>
    %24 = math.tanh %23 : vector<3x32xf32>
    %25 = vector.extract_strided_slice %8 {offsets = [0, 3, 0], sizes = [3, 1, 32], strides = [1, 1, 1]} : vector<3x8x32xf32> to vector<3x1x32xf32>
    %26 = vector.shape_cast %25 : vector<3x1x32xf32> to vector<3x32xf32>
    %cst_12 = arith.constant dense<0.000000e+00> : vector<3x32xf32>
    %27 = tpu.matmul %24, %3, %cst_12 {dimension_numbers = #tpu.dot_dimension_numbers<[1], [0], [0], [1], [0, 0, 1, 1], [], []>} : vector<3x32xf32>, vector<32x32xf32>, vector<3x32xf32> -> vector<3x32xf32>
    %28 = arith.addf %26, %27 : vector<3x32xf32>
    %29 = math.tanh %28 : vector<3x32xf32>
    %30 = vector.extract_strided_slice %8 {offsets = [0, 4, 0], sizes = [3, 1, 32], strides = [1, 1, 1]} : vector<3x8x32xf32> to vector<3x1x32xf32>
    %31 = vector.shape_cast %30 : vector<3x1x32xf32> to vector<3x32xf32>
    %cst_13 = arith.constant dense<0.000000e+00> : vector<3x32xf32>
    %32 = tpu.matmul %29, %3, %cst_13 {dimension_numbers = #tpu.dot_dimension_numbers<[1], [0], [0], [1], [0, 0, 1, 1], [], []>} : vector<3x32xf32>, vector<32x32xf32>, vector<3x32xf32> -> vector<3x32xf32>
    %33 = arith.addf %31, %32 : vector<3x32xf32>
    %34 = math.tanh %33 : vector<3x32xf32>
    %35 = vector.extract_strided_slice %8 {offsets = [0, 5, 0], sizes = [3, 1, 32], strides = [1, 1, 1]} : vector<3x8x32xf32> to vector<3x1x32xf32>
    %36 = vector.shape_cast %35 : vector<3x1x32xf32> to vector<3x32xf32>
    %cst_14 = arith.constant dense<0.000000e+00> : vector<3x32xf32>
    %37 = tpu.matmul %34, %3, %cst_14 {dimension_numbers = #tpu.dot_dimension_numbers<[1], [0], [0], [1], [0, 0, 1, 1], [], []>} : vector<3x32xf32>, vector<32x32xf32>, vector<3x32xf32> -> vector<3x32xf32>
    %38 = arith.addf %36, %37 : vector<3x32xf32>
    %39 = math.tanh %38 : vector<3x32xf32>
    %40 = vector.extract_strided_slice %8 {offsets = [0, 6, 0], sizes = [3, 1, 32], strides = [1, 1, 1]} : vector<3x8x32xf32> to vector<3x1x32xf32>
    %41 = vector.shape_cast %40 : vector<3x1x32xf32> to vector<3x32xf32>
    %cst_15 = arith.constant dense<0.000000e+00> : vector<3x32xf32>
    %42 = tpu.matmul %39, %3, %cst_15 {dimension_numbers = #tpu.dot_dimension_numbers<[1], [0], [0], [1], [0, 0, 1, 1], [], []>} : vector<3x32xf32>, vector<32x32xf32>, vector<3x32xf32> -> vector<3x32xf32>
    %43 = arith.addf %41, %42 : vector<3x32xf32>
    %44 = math.tanh %43 : vector<3x32xf32>
    %45 = vector.extract_strided_slice %8 {offsets = [0, 7, 0], sizes = [3, 1, 32], strides = [1, 1, 1]} : vector<3x8x32xf32> to vector<3x1x32xf32>
    %46 = vector.shape_cast %45 : vector<3x1x32xf32> to vector<3x32xf32>
    %cst_16 = arith.constant dense<0.000000e+00> : vector<3x32xf32>
    %47 = tpu.matmul %44, %3, %cst_16 {dimension_numbers = #tpu.dot_dimension_numbers<[1], [0], [0], [1], [0, 0, 1, 1], [], []>} : vector<3x32xf32>, vector<32x32xf32>, vector<3x32xf32> -> vector<3x32xf32>
    %48 = arith.addf %46, %47 : vector<3x32xf32>
    %49 = math.tanh %48 : vector<3x32xf32>
    %c0_17 = arith.constant 0 : index
    %c0_18 = arith.constant 0 : index
    %c0_19 = arith.constant 0 : index
    %50 = vector.load %arg11[%c0_17, %c0_18, %c0_19] : memref<2x3x32xf32, #tpu.memory_space<vmem>>, vector<1x3x32xf32>
    %51 = vector.shape_cast %50 : vector<1x3x32xf32> to vector<3x32xf32>
    %52 = vector.shape_cast %49 : vector<3x32xf32> to vector<1x3x32xf32>
    tpu.vector_store %arg11[%c0_17, %c0_18, %c0_19], %52 {strides = array<i32>} : memref<2x3x32xf32, #tpu.memory_space<vmem>>, vector<1x3x32xf32>,
    %53 = vector.shape_cast %14 : vector<3x32xf32> to vector<3x1x32xf32>
    %54 = vector.shape_cast %19 : vector<3x32xf32> to vector<3x1x32xf32>
    %55 = vector.shape_cast %24 : vector<3x32xf32> to vector<3x1x32xf32>
    %56 = vector.shape_cast %29 : vector<3x32xf32> to vector<3x1x32xf32>
    %57 = vector.shape_cast %34 : vector<3x32xf32> to vector<3x1x32xf32>
    %58 = vector.shape_cast %39 : vector<3x32xf32> to vector<3x1x32xf32>
    %59 = vector.shape_cast %44 : vector<3x32xf32> to vector<3x1x32xf32>
    %60 = vector.shape_cast %49 : vector<3x32xf32> to vector<3x1x32xf32>
    %61 = tpu.concatenate %53, %54, %55, %56, %57, %58, %59, %60 in 1 : vector<3x1x32xf32>, vector<3x1x32xf32>, vector<3x1x32xf32>, vector<3x1x32xf32>, vector<3x1x32xf32>, vector<3x1x32xf32>, vector<3x1x32xf32>, vector<3x1x32xf32> -> vector<3x8x32xf32>
    %62 = vector.shape_cast %61 : vector<3x8x32xf32> to vector<24x32xf32>
    %c0_20 = arith.constant 0 : index
    %c0_21 = arith.constant 0 : index
    %63 = vector.load %arg5[%c0_20, %c0_21] : memref<32x32xf32, #tpu.memory_space<vmem>>, vector<32x32xf32>
    %c0_22 = arith.constant 0 : index
    %c0_23 = arith.constant 0 : index
    %64 = vector.load %arg6[%c0_22, %c0_23] : memref<32x32xf32, #tpu.memory_space<vmem>>, vector<32x32xf32>
    %c0_24 = arith.constant 0 : index
    %c0_25 = arith.constant 0 : index
    %65 = vector.load %arg7[%c0_24, %c0_25] : memref<1x32xf32, #tpu.memory_space<vmem>>, vector<1x32xf32>
    %cst_26 = arith.constant dense<0.000000e+00> : vector<24x32xf32>
    %66 = tpu.matmul %62, %63, %cst_26 {dimension_numbers = #tpu.dot_dimension_numbers<[1], [0], [0], [1], [0, 0, 1, 1], [], []>} : vector<24x32xf32>, vector<32x32xf32>, vector<24x32xf32> -> vector<24x32xf32>
    %67 = vector.broadcast %65 : vector<1x32xf32> to vector<24x32xf32>
    %68 = arith.addf %66, %67 : vector<24x32xf32>
    %69 = vector.shape_cast %68 : vector<24x32xf32> to vector<3x8x32xf32>
    %cst_27 = arith.constant 0.000000e+00 : f32
    %70 = vector.broadcast %cst_27 : f32 to vector<3x32xf32>
    %71 = vector.extract_strided_slice %69 {offsets = [0, 0, 0], sizes = [3, 1, 32], strides = [1, 1, 1]} : vector<3x8x32xf32> to vector<3x1x32xf32>
    %72 = vector.shape_cast %71 : vector<3x1x32xf32> to vector<3x32xf32>
    %cst_28 = arith.constant dense<0.000000e+00> : vector<3x32xf32>
    %73 = tpu.matmul %70, %64, %cst_28 {dimension_numbers = #tpu.dot_dimension_numbers<[1], [0], [0], [1], [0, 0, 1, 1], [], []>} : vector<3x32xf32>, vector<32x32xf32>, vector<3x32xf32> -> vector<3x32xf32>
    %74 = arith.addf %72, %73 : vector<3x32xf32>
    %75 = math.tanh %74 : vector<3x32xf32>
    %76 = vector.extract_strided_slice %69 {offsets = [0, 1, 0], sizes = [3, 1, 32], strides = [1, 1, 1]} : vector<3x8x32xf32> to vector<3x1x32xf32>
    %77 = vector.shape_cast %76 : vector<3x1x32xf32> to vector<3x32xf32>
    %cst_29 = arith.constant dense<0.000000e+00> : vector<3x32xf32>
    %78 = tpu.matmul %75, %64, %cst_29 {dimension_numbers = #tpu.dot_dimension_numbers<[1], [0], [0], [1], [0, 0, 1, 1], [], []>} : vector<3x32xf32>, vector<32x32xf32>, vector<3x32xf32> -> vector<3x32xf32>
    %79 = arith.addf %77, %78 : vector<3x32xf32>
    %80 = math.tanh %79 : vector<3x32xf32>
    %81 = vector.extract_strided_slice %69 {offsets = [0, 2, 0], sizes = [3, 1, 32], strides = [1, 1, 1]} : vector<3x8x32xf32> to vector<3x1x32xf32>
    %82 = vector.shape_cast %81 : vector<3x1x32xf32> to vector<3x32xf32>
    %cst_30 = arith.constant dense<0.000000e+00> : vector<3x32xf32>
    %83 = tpu.matmul %80, %64, %cst_30 {dimension_numbers = #tpu.dot_dimension_numbers<[1], [0], [0], [1], [0, 0, 1, 1], [], []>} : vector<3x32xf32>, vector<32x32xf32>, vector<3x32xf32> -> vector<3x32xf32>
    %84 = arith.addf %82, %83 : vector<3x32xf32>
    %85 = math.tanh %84 : vector<3x32xf32>
    %86 = vector.extract_strided_slice %69 {offsets = [0, 3, 0], sizes = [3, 1, 32], strides = [1, 1, 1]} : vector<3x8x32xf32> to vector<3x1x32xf32>
    %87 = vector.shape_cast %86 : vector<3x1x32xf32> to vector<3x32xf32>
    %cst_31 = arith.constant dense<0.000000e+00> : vector<3x32xf32>
    %88 = tpu.matmul %85, %64, %cst_31 {dimension_numbers = #tpu.dot_dimension_numbers<[1], [0], [0], [1], [0, 0, 1, 1], [], []>} : vector<3x32xf32>, vector<32x32xf32>, vector<3x32xf32> -> vector<3x32xf32>
    %89 = arith.addf %87, %88 : vector<3x32xf32>
    %90 = math.tanh %89 : vector<3x32xf32>
    %91 = vector.extract_strided_slice %69 {offsets = [0, 4, 0], sizes = [3, 1, 32], strides = [1, 1, 1]} : vector<3x8x32xf32> to vector<3x1x32xf32>
    %92 = vector.shape_cast %91 : vector<3x1x32xf32> to vector<3x32xf32>
    %cst_32 = arith.constant dense<0.000000e+00> : vector<3x32xf32>
    %93 = tpu.matmul %90, %64, %cst_32 {dimension_numbers = #tpu.dot_dimension_numbers<[1], [0], [0], [1], [0, 0, 1, 1], [], []>} : vector<3x32xf32>, vector<32x32xf32>, vector<3x32xf32> -> vector<3x32xf32>
    %94 = arith.addf %92, %93 : vector<3x32xf32>
    %95 = math.tanh %94 : vector<3x32xf32>
    %96 = vector.extract_strided_slice %69 {offsets = [0, 5, 0], sizes = [3, 1, 32], strides = [1, 1, 1]} : vector<3x8x32xf32> to vector<3x1x32xf32>
    %97 = vector.shape_cast %96 : vector<3x1x32xf32> to vector<3x32xf32>
    %cst_33 = arith.constant dense<0.000000e+00> : vector<3x32xf32>
    %98 = tpu.matmul %95, %64, %cst_33 {dimension_numbers = #tpu.dot_dimension_numbers<[1], [0], [0], [1], [0, 0, 1, 1], [], []>} : vector<3x32xf32>, vector<32x32xf32>, vector<3x32xf32> -> vector<3x32xf32>
    %99 = arith.addf %97, %98 : vector<3x32xf32>
    %100 = math.tanh %99 : vector<3x32xf32>
    %101 = vector.extract_strided_slice %69 {offsets = [0, 6, 0], sizes = [3, 1, 32], strides = [1, 1, 1]} : vector<3x8x32xf32> to vector<3x1x32xf32>
    %102 = vector.shape_cast %101 : vector<3x1x32xf32> to vector<3x32xf32>
    %cst_34 = arith.constant dense<0.000000e+00> : vector<3x32xf32>
    %103 = tpu.matmul %100, %64, %cst_34 {dimension_numbers = #tpu.dot_dimension_numbers<[1], [0], [0], [1], [0, 0, 1, 1], [], []>} : vector<3x32xf32>, vector<32x32xf32>, vector<3x32xf32> -> vector<3x32xf32>
    %104 = arith.addf %102, %103 : vector<3x32xf32>
    %105 = math.tanh %104 : vector<3x32xf32>
    %106 = vector.extract_strided_slice %69 {offsets = [0, 7, 0], sizes = [3, 1, 32], strides = [1, 1, 1]} : vector<3x8x32xf32> to vector<3x1x32xf32>
    %107 = vector.shape_cast %106 : vector<3x1x32xf32> to vector<3x32xf32>
    %cst_35 = arith.constant dense<0.000000e+00> : vector<3x32xf32>
    %108 = tpu.matmul %105, %64, %cst_35 {dimension_numbers = #tpu.dot_dimension_numbers<[1], [0], [0], [1], [0, 0, 1, 1], [], []>} : vector<3x32xf32>, vector<32x32xf32>, vector<3x32xf32> -> vector<3x32xf32>
    %109 = arith.addf %107, %108 : vector<3x32xf32>
    %110 = math.tanh %109 : vector<3x32xf32>
    %c1 = arith.constant 1 : index
    %c0_36 = arith.constant 0 : index
    %c0_37 = arith.constant 0 : index
    %111 = vector.load %arg11[%c1, %c0_36, %c0_37] : memref<2x3x32xf32, #tpu.memory_space<vmem>>, vector<1x3x32xf32>
    %112 = vector.shape_cast %111 : vector<1x3x32xf32> to vector<3x32xf32>
    %113 = vector.shape_cast %110 : vector<3x32xf32> to vector<1x3x32xf32>
    tpu.vector_store %arg11[%c1, %c0_36, %c0_37], %113 {strides = array<i32>} : memref<2x3x32xf32, #tpu.memory_space<vmem>>, vector<1x3x32xf32>,
    %114 = vector.shape_cast %75 : vector<3x32xf32> to vector<3x1x32xf32>
    %115 = vector.shape_cast %80 : vector<3x32xf32> to vector<3x1x32xf32>
    %116 = vector.shape_cast %85 : vector<3x32xf32> to vector<3x1x32xf32>
    %117 = vector.shape_cast %90 : vector<3x32xf32> to vector<3x1x32xf32>
    %118 = vector.shape_cast %95 : vector<3x32xf32> to vector<3x1x32xf32>
    %119 = vector.shape_cast %100 : vector<3x32xf32> to vector<3x1x32xf32>
    %120 = vector.shape_cast %105 : vector<3x32xf32> to vector<3x1x32xf32>
    %121 = vector.shape_cast %110 : vector<3x32xf32> to vector<3x1x32xf32>
    %122 = tpu.concatenate %114, %115, %116, %117, %118, %119, %120, %121 in 1 : vector<3x1x32xf32>, vector<3x1x32xf32>, vector<3x1x32xf32>, vector<3x1x32xf32>, vector<3x1x32xf32>, vector<3x1x32xf32>, vector<3x1x32xf32>, vector<3x1x32xf32> -> vector<3x8x32xf32>
    %123 = vector.shape_cast %122 : vector<3x8x32xf32> to vector<24x32xf32>
    %c0_38 = arith.constant 0 : index
    %c0_39 = arith.constant 0 : index
    %124 = vector.load %arg8[%c0_38, %c0_39] : memref<32x16xf32, #tpu.memory_space<vmem>>, vector<32x16xf32>
    %cst_40 = arith.constant dense<0.000000e+00> : vector<24x16xf32>
    %125 = tpu.matmul %123, %124, %cst_40 {dimension_numbers = #tpu.dot_dimension_numbers<[1], [0], [0], [1], [0, 0, 1, 1], [], []>} : vector<24x32xf32>, vector<32x16xf32>, vector<24x16xf32> -> vector<24x16xf32>
    %c0_41 = arith.constant 0 : index
    %c0_42 = arith.constant 0 : index
    %126 = vector.load %arg9[%c0_41, %c0_42] : memref<1x16xf32, #tpu.memory_space<vmem>>, vector<1x16xf32>
    %127 = vector.broadcast %126 : vector<1x16xf32> to vector<24x16xf32>
    %128 = arith.addf %125, %127 : vector<24x16xf32>
    %c0_43 = arith.constant 0 : index
    %c0_44 = arith.constant 0 : index
    %129 = vector.load %arg10[%c0_43, %c0_44] : memref<24x16xf32, #tpu.memory_space<vmem>>, vector<24x16xf32>
    tpu.vector_store %arg10[%c0_43, %c0_44], %128 {strides = array<i32>} : memref<24x16xf32, #tpu.memory_space<vmem>>, vector<24x16xf32>,
    return
  }
  func.func @transform_0(%arg0: i32) -> (i32, i32, i32) {
    %c0_i32 = arith.constant 0 : i32
    %c0_i32_0 = arith.constant 0 : i32
    %c0_i32_1 = arith.constant 0 : i32
    %c0_i32_2 = arith.constant 0 : i32
    return %c0_i32, %c0_i32_0, %c0_i32_1 : i32, i32, i32
  }
  func.func @transform_1(%arg0: i32) -> (i32, i32) {
    %c0_i32 = arith.constant 0 : i32
    %c0_i32_0 = arith.constant 0 : i32
    %c0_i32_1 = arith.constant 0 : i32
    return %c0_i32, %c0_i32_0 : i32, i32
  }
  func.func @transform_2(%arg0: i32) -> (i32, i32) {
    %c0_i32 = arith.constant 0 : i32
    %c0_i32_0 = arith.constant 0 : i32
    %c0_i32_1 = arith.constant 0 : i32
    return %c0_i32, %c0_i32_0 : i32, i32
  }
  func.func @transform_3(%arg0: i32) -> (i32, i32) {
    %c0_i32 = arith.constant 0 : i32
    %c0_i32_0 = arith.constant 0 : i32
    %c0_i32_1 = arith.constant 0 : i32
    return %c0_i32, %c0_i32_0 : i32, i32
  }
  func.func @transform_4(%arg0: i32) -> (i32, i32) {
    %c0_i32 = arith.constant 0 : i32
    %c0_i32_0 = arith.constant 0 : i32
    %c0_i32_1 = arith.constant 0 : i32
    return %c0_i32, %c0_i32_0 : i32, i32
  }
  func.func @transform_5(%arg0: i32) -> (i32, i32) {
    %c0_i32 = arith.constant 0 : i32
    %c0_i32_0 = arith.constant 0 : i32
    %c0_i32_1 = arith.constant 0 : i32
    return %c0_i32, %c0_i32_0 : i32, i32
  }
  func.func @transform_6(%arg0: i32) -> (i32, i32) {
    %c0_i32 = arith.constant 0 : i32
    %c0_i32_0 = arith.constant 0 : i32
    %c0_i32_1 = arith.constant 0 : i32
    return %c0_i32, %c0_i32_0 : i32, i32
  }
  func.func @transform_7(%arg0: i32) -> (i32, i32) {
    %c0_i32 = arith.constant 0 : i32
    %c0_i32_0 = arith.constant 0 : i32
    %c0_i32_1 = arith.constant 0 : i32
    return %c0_i32, %c0_i32_0 : i32, i32
  }
  func.func @transform_8(%arg0: i32) -> (i32, i32) {
    %c0_i32 = arith.constant 0 : i32
    %c0_i32_0 = arith.constant 0 : i32
    %c0_i32_1 = arith.constant 0 : i32
    return %c0_i32, %c0_i32_0 : i32, i32
  }
  func.func @transform_9(%arg0: i32) -> (i32, i32) {
    %c0_i32 = arith.constant 0 : i32
    %c0_i32_0 = arith.constant 0 : i32
    %c0_i32_1 = arith.constant 0 : i32
    return %c0_i32, %c0_i32_0 : i32, i32
  }
  func.func @transform_10(%arg0: i32) -> (i32, i32, i32) {
    %c0_i32 = arith.constant 0 : i32
    %c0_i32_0 = arith.constant 0 : i32
    %c0_i32_1 = arith.constant 0 : i32
    %c0_i32_2 = arith.constant 0 : i32
    return %c0_i32, %c0_i32_0, %c0_i32_1 : i32, i32, i32
  }
}

</mosaic_0001>

<llo_original>
// kernel: model_forward.1
$region0: #{model_forward.1}
  #allocation0 [shape = 'u32[]', space=smem, size = 0x4, offset = 0x4, fixed_abs, tag = 'smem constant byte address 0x4 - core index']
  #allocation1 [shape = 'u32[144,128]{1,0:T(1,128)}', space=vmem, size = 0x12000, scoped, tag = 'internal scratch']
  %s0 = inlined_call_operand.hbm [shape: f32[3,8,16], index: 0, kind: input, shape index: {}]
  %s1 = inlined_call_operand.hbm [shape: f32[16,32], index: 1, kind: input, shape index: {}]
  %s2 = inlined_call_operand.vmem [shape: f32[32,32], index: 2, kind: input, shape index: {}]
  %s3 = inlined_call_operand.vmem [shape: f32[1,32], index: 3, kind: input, shape index: {}]
  %s4 = inlined_call_operand.vmem [shape: f32[32,32], index: 4, kind: input, shape index: {}]
  %s5 = inlined_call_operand.hbm [shape: f32[32,32], index: 5, kind: input, shape index: {}]
  %s6 = inlined_call_operand.vmem [shape: f32[1,32], index: 6, kind: input, shape index: {}]
  %s7 = inlined_call_operand.vmem [shape: f32[32,16], index: 7, kind: input, shape index: {}]
  %s8 = inlined_call_operand.hbm [shape: f32[1,16], index: 8, kind: input, shape index: {}]
  %s9 = inlined_call_operand.vmem [shape: f32[24,16], index: 9, kind: output, shape index: {0}]
  %s10 = inlined_call_operand.vmem [shape: f32[2,3,32], index: 10, kind: output, shape index: {1}]
  %11 = xla_tuple %s9, %s10
  %s12 = sld [smem:[#allocation0]]
  $region70: #{model_forward.1} parent=0
    _
  %s14 = ssub.s32 1, %s12
  %s15 = scalar_select 0, %s14, %s12
  $region1: #{model_forward.1} parent=0
    #allocation2 [shape = 'u8[12288]{0}', space=vmem, size = 0x3000, scoped, tag = 'input window, operand 0, single buffered']
    #allocation3 [shape = 's32[1]{0}', space=sflag, size = 0x4, scoped, tag = 'scoped memory for model_forward.1']
    #allocation4 [shape = 'u8[8192]{0}', space=vmem, size = 0x2000, scoped, tag = 'input window, operand 1, single buffered']
    #allocation5 [shape = 's32[1]{0}', space=sflag, size = 0x4, scoped, tag = 'scoped memory for model_forward.1']
    #allocation6 [shape = 'u8[16384]{0}', space=vmem, size = 0x4000, scoped, tag = 'input window, operand 5, single buffered']
    #allocation7 [shape = 'u8[512]{0}', space=vmem, size = 0x400, scoped, tag = 'input window, operand 8, single buffered']
    #allocation8 [shape = 's32[1]{0}', space=sflag, size = 0x4, scoped, tag = 'scoped memory for model_forward.1']
    %16 = vsyncpa [#allocation3], 0
    %17 = vsyncpa [#allocation5], 0
    %18 = vsyncpa [#allocation8], 0
    // Predicated region
    $region2: #{model_forward.1} parent=1 // pred_check
      _
    $region3: #{model_forward.1} parent=1 // pred_check_branch
      %20 = sbr.rel (0) target = $region5
    $region4: #{model_forward.1} parent=1 // pred_region
      %s22 = ssub.s32 384, 384
      %23 = vsyncadd [#allocation3], %s22
      %s24 = sshll.u32 [#allocation2], 4
      %s25 = int_to_ptr.vmem [resolvable:$true] %s24
      %30 = dma.hbm_to_vmem [thread:$0]  %s0, 384, %s25, [#allocation3], 128, 128, 8
    $region5: #{model_forward.1} parent=1 // pred_fallthru
      _
    // Predicated region
    $region6: #{model_forward.1} parent=1 // pred_check
      _
    $region7: #{model_forward.1} parent=1 // pred_check_branch
      %32 = sbr.rel (0) target = $region9
    $region8: #{model_forward.1} parent=1 // pred_region
      %s34 = ssub.s32 256, 256
      %35 = vsyncadd [#allocation5], %s34
      %s36 = sshll.u32 [#allocation4], 4
      %s37 = int_to_ptr.vmem [resolvable:$true] %s36
      %42 = dma.hbm_to_vmem [thread:$0]  %s1, 256, %s37, [#allocation5], 128, 128, 8
    $region9: #{model_forward.1} parent=1 // pred_fallthru
      _
    // Predicated region
    $region10: #{model_forward.1} parent=1 // pred_check
      _
    $region11: #{model_forward.1} parent=1 // pred_check_branch
      %44 = sbr.rel (0) target = $region13
    $region12: #{model_forward.1} parent=1 // pred_region
      _
    $region13: #{model_forward.1} parent=1 // pred_fallthru
      _
    // Predicated region
    $region14: #{model_forward.1} parent=1 // pred_check
      _
    $region15: #{model_forward.1} parent=1 // pred_check_branch
      %46 = sbr.rel (0) target = $region17
    $region16: #{model_forward.1} parent=1 // pred_region
      _
    $region17: #{model_forward.1} parent=1 // pred_fallthru
      _
    // Predicated region
    $region18: #{model_forward.1} parent=1 // pred_check
      _
    $region19: #{model_forward.1} parent=1 // pred_check_branch
      %48 = sbr.rel (0) target = $region21
    $region20: #{model_forward.1} parent=1 // pred_region
      _
    $region21: #{model_forward.1} parent=1 // pred_fallthru
      _
    // Predicated region
    $region22: #{model_forward.1} parent=1 // pred_check
      _
    $region23: #{model_forward.1} parent=1 // pred_check_branch
      %50 = sbr.rel (0) target = $region25
    $region24: #{model_forward.1} parent=1 // pred_region
      %s52 = ssub.s32 512, 512
      %53 = vsyncadd [#allocation5], %s52
      %s54 = sshll.u32 [#allocation6], 4
      %s55 = int_to_ptr.vmem [resolvable:$true] %s54
      %60 = dma.hbm_to_vmem [thread:$0]  %s5, 512, %s55, [#allocation5], 128, 128, 8
    $region25: #{model_forward.1} parent=1 // pred_fallthru
      _
    // Predicated region
    $region26: #{model_forward.1} parent=1 // pred_check
      _
    $region27: #{model_forward.1} parent=1 // pred_check_branch
      %62 = sbr.rel (0) target = $region29
    $region28: #{model_forward.1} parent=1 // pred_region
      _
    $region29: #{model_forward.1} parent=1 // pred_fallthru
      _
    // Predicated region
    $region30: #{model_forward.1} parent=1 // pred_check
      _
    $region31: #{model_forward.1} parent=1 // pred_check_branch
      %64 = sbr.rel (0) target = $region33
    $region32: #{model_forward.1} parent=1 // pred_region
      _
    $region33: #{model_forward.1} parent=1 // pred_fallthru
      _
    // Predicated region
    $region34: #{model_forward.1} parent=1 // pred_check
      _
    $region35: #{model_forward.1} parent=1 // pred_check_branch
      %66 = sbr.rel (0) target = $region37
    $region36: #{model_forward.1} parent=1 // pred_region
      %s68 = ssub.s32 16, 16
      %69 = vsyncadd [#allocation8], %s68
      %s71 = sshll.u32 [#allocation7], 4
      %s72 = int_to_ptr.vmem [resolvable:$true] %s71
      %74 = dma.hbm_to_vmem [thread:$0]  %s8, 16, %s72, [#allocation8]
    $region37: #{model_forward.1} parent=1 // pred_fallthru
      _
    // Predicated region
    $region38: #{model_forward.1} parent=1 // pred_check
      _
    $region39: #{model_forward.1} parent=1 // pred_check_branch
      %76 = sbr.rel (0) target = $region41
    $region40: #{model_forward.1} parent=1 // pred_region
      %77 = dma.done [#allocation3], 384
    $region41: #{model_forward.1} parent=1 // pred_fallthru
      _
    // Predicated region
    $region42: #{model_forward.1} parent=1 // pred_check
      _
    $region43: #{model_forward.1} parent=1 // pred_check_branch
      %79 = sbr.rel (0) target = $region45
    $region44: #{model_forward.1} parent=1 // pred_region
      %80 = dma.done [#allocation5], 256
    $region45: #{model_forward.1} parent=1 // pred_fallthru
      _
    // Predicated region
    $region46: #{model_forward.1} parent=1 // pred_check
      _
    $region47: #{model_forward.1} parent=1 // pred_check_branch
      %82 = sbr.rel (0) target = $region49
    $region48: #{model_forward.1} parent=1 // pred_region
      %83 = dma.done [#allocation5], 512
    $region49: #{model_forward.1} parent=1 // pred_fallthru
      _
    // Predicated region
    $region50: #{model_forward.1} parent=1 // pred_check
      _
    $region51: #{model_forward.1} parent=1 // pred_check_branch
      %85 = sbr.rel (0) target = $region53
    $region52: #{model_forward.1} parent=1 // pred_region
      %86 = dma.done [#allocation8], 16
    $region53: #{model_forward.1} parent=1 // pred_fallthru
      _
    %v87 = vld [vmem:[#allocation2] sm:$0xff]
    %v88 = vld [vmem:[#allocation2 + $0x8] sm:$0xff]
    %v89 = vld [vmem:[#allocation2 + $0x10] sm:$0xff]
    %v90 = vld [vmem:[#allocation4] sm:$0xff]
    %v91 = vld [vmem:[#allocation4 + $0x8] sm:$0xff]
    %v92 = vld [vmem:[%s2] sm:$0xff]
    %v93 = vld [vmem:[%s2 + $0x8] sm:$0xff]
    %v94 = vld [vmem:[%s2 + $0x10] sm:$0xff]
    %v95 = vld [vmem:[%s2 + $0x18] sm:$0xff]
    %v96 = vld [vmem:[%s3] sm:$0x1]
    %v98 = vlaneseq
    %v99 = vshrl.u32 %v98, 7
    %v100 = vsub.s32 0, %v99
    %v101 = vrot.slane %v96, %v100
    %vm103 = vcmask 130048
    %v105 = vsel %vm103, %v87, 0
    %v108 = vsel %vm103, %v88, 0
    %v111 = vsel %vm103, %v89, 0
    %113 = vmatprep.subr.mxu0 0.0
    %114 = vmatpush1.msra.mxu0 %v90
    %115 = vmatprep.subr.mxu0 0.0
    %116 = vmatpush1.msra.mxu0 %v91
    %117 = vmatprep.subr.mxu0 0.0
    %118 = vmatpush1.msra.mxu0 0.0
    %119 = vmatprep.subr.mxu0 0.0
    %120 = vmatpush1.msra.mxu0 0.0
    %121 = vmatprep.subr.mxu0 0.0
    %122 = vmatpush1.msra.mxu0 0.0
    %123 = vmatprep.subr.mxu0 0.0
    %124 = vmatpush1.msra.mxu0 0.0
    %125 = vmatprep.subr.mxu0 0.0
    %126 = vmatpush1.msra.mxu0 0.0
    %127 = vmatprep.subr.mxu0 0.0
    %128 = vmatpush1.msra.mxu0 0.0
    %129 = vmatprep.subr.mxu0 0.0
    %130 = vmatpush1.msra.mxu0 0.0
    %131 = vmatprep.subr.mxu0 0.0
    %132 = vmatpush1.msra.mxu0 0.0
    %133 = vmatprep.subr.mxu0 0.0
    %134 = vmatpush1.msra.mxu0 0.0
    %135 = vmatprep.subr.mxu0 0.0
    %136 = vmatpush1.msra.mxu0 0.0
    %137 = vmatprep.subr.mxu0 0.0
    %138 = vmatpush1.msra.mxu0 0.0
    %139 = vmatprep.subr.mxu0 0.0
    %140 = vmatpush1.msra.mxu0 0.0
    %141 = vmatprep.subr.mxu0 0.0
    %142 = vmatpush1.msra.mxu0 0.0
    %143 = vmatprep.subr.mxu0 0.0
    %144 = vmatpush1.msra.mxu0 0.0
    %145 = vmatprep.subr.mxu0 0.0
    %146 = vmatpush1.msra.mxu0 0.0
    %147 = vmatprep.subr.mxu0 0.0
    %148 = vmatpush1.msra.mxu0 0.0
    %149 = vmatprep.subr.mxu0 0.0
    %150 = vmatpush1.msra.mxu0 0.0
    %151 = vmatprep.subr.mxu0 0.0
    %152 = vmatpush1.msra.mxu0 0.0
    %153 = vmatprep.subr.mxu0 0.0
    %154 = vmatpush1.msra.mxu0 0.0
    %155 = vmatprep.subr.mxu0 0.0
    %156 = vmatpush1.msra.mxu0 0.0
    %157 = vmatprep.subr.mxu0 0.0
    %158 = vmatpush1.msra.mxu0 0.0
    %159 = vmatprep.subr.mxu0 0.0
    %160 = vmatpush1.msra.mxu0 0.0
    %161 = vmatprep.subr.mxu0 0.0
    %162 = vmatpush1.msra.mxu0 0.0
    %163 = vmatprep.subr.mxu0 0.0
    %164 = vmatpush1.msra.mxu0 0.0
    %165 = vmatprep.subr.mxu0 0.0
    %166 = vmatpush1.msra.mxu0 0.0
    %167 = vmatprep.subr.mxu0 0.0
    %168 = vmatpush1.msra.mxu0 0.0
    %169 = vmatprep.subr.mxu0 0.0
    %170 = vmatpush1.msra.mxu0 0.0
    %171 = vmatprep.subr.mxu0 0.0
    %172 = vmatpush1.msra.mxu0 0.0
    %173 = vmatprep.subr.mxu0 0.0
    %174 = vmatpush1.msra.mxu0 0.0
    %175 = vmatprep.subr.mxu0 0.0
    %176 = vmatpush1.msra.mxu0 0.0
    %177 = vmatprep.mubr.f32.mxu0 0.0
    %178 = vmatmul.mubr.f32.gmra.mrb[0].mxu0 %v105
    %v179 = vpop.f32.mrb[0].mxu0
    %v180 = vadd.f32 %v101, %v179
    %v181 = vpop.f32.mrb[0].mxu0
    %182 = vmatprep.mubr.f32.mxu0 0.0
    %183 = vmatmul.mubr.f32.gmra.mrb[0].mxu0 %v108
    %v184 = vpop.f32.mrb[0].mxu0
    %v185 = vadd.f32 %v101, %v184
    %v186 = vpop.f32.mrb[0].mxu0
    %187 = vmatprep.mubr.f32.mxu0 0.0
    %188 = vmatmul.mubr.f32.gmra.mrb[0].mxu0 %v111
    %v189 = vpop.f32.mrb[0].mxu0
    %v190 = vadd.f32 %v101, %v189
    %v191 = vpop.f32.mrb[0].mxu0
    %192 = vdwg.mxu0
    %vm193 = vcmask 261120
    %v195 = vsel %vm193, 0.0, 0
    %197 = vmatprep.subr.mxu0 0.0
    %198 = vmatpush1.msra.mxu0 %v92
    %199 = vmatprep.subr.mxu0 0.0
    %200 = vmatpush1.msra.mxu0 %v93
    %201 = vmatprep.subr.mxu0 0.0
    %202 = vmatpush1.msra.mxu0 %v94
    %203 = vmatprep.subr.mxu0 0.0
    %204 = vmatpush1.msra.mxu0 %v95
    %205 = vmatprep.subr.mxu0 0.0
    %206 = vmatpush1.msra.mxu0 0.0
    %207 = vmatprep.subr.mxu0 0.0
    %208 = vmatpush1.msra.mxu0 0.0
    %209 = vmatprep.subr.mxu0 0.0
    %210 = vmatpush1.msra.mxu0 0.0
    %211 = vmatprep.subr.mxu0 0.0
    %212 = vmatpush1.msra.mxu0 0.0
    %213 = vmatprep.subr.mxu0 0.0
    %214 = vmatpush1.msra.mxu0 0.0
    %215 = vmatprep.subr.mxu0 0.0
    %216 = vmatpush1.msra.mxu0 0.0
    %217 = vmatprep.subr.mxu0 0.0
    %218 = vmatpush1.msra.mxu0 0.0
    %219 = vmatprep.subr.mxu0 0.0
    %220 = vmatpush1.msra.mxu0 0.0
    %221 = vmatprep.subr.mxu0 0.0
    %222 = vmatpush1.msra.mxu0 0.0
    %223 = vmatprep.subr.mxu0 0.0
    %224 = vmatpush1.msra.mxu0 0.0
    %225 = vmatprep.subr.mxu0 0.0
    %226 = vmatpush1.msra.mxu0 0.0
    %227 = vmatprep.subr.mxu0 0.0
    %228 = vmatpush1.msra.mxu0 0.0
    %229 = vmatprep.subr.mxu0 0.0
    %230 = vmatpush1.msra.mxu0 0.0
    %231 = vmatprep.subr.mxu0 0.0
    %232 = vmatpush1.msra.mxu0 0.0
    %233 = vmatprep.subr.mxu0 0.0
    %234 = vmatpush1.msra.mxu0 0.0
    %235 = vmatprep.subr.mxu0 0.0
    %236 = vmatpush1.msra.mxu0 0.0
    %237 = vmatprep.subr.mxu0 0.0
    %238 = vmatpush1.msra.mxu0 0.0
    %239 = vmatprep.subr.mxu0 0.0
    %240 = vmatpush1.msra.mxu0 0.0
    %241 = vmatprep.subr.mxu0 0.0
    %242 = vmatpush1.msra.mxu0 0.0
    %243 = vmatprep.subr.mxu0 0.0
    %244 = vmatpush1.msra.mxu0 0.0
    %245 = vmatprep.subr.mxu0 0.0
    %246 = vmatpush1.msra.mxu0 0.0
    %247 = vmatprep.subr.mxu0 0.0
    %248 = vmatpush1.msra.mxu0 0.0
    %249 = vmatprep.subr.mxu0 0.0
    %250 = vmatpush1.msra.mxu0 0.0
    %251 = vmatprep.subr.mxu0 0.0
    %252 = vmatpush1.msra.mxu0 0.0
    %253 = vmatprep.subr.mxu0 0.0
    %254 = vmatpush1.msra.mxu0 0.0
    %255 = vmatprep.subr.mxu0 0.0
    %256 = vmatpush1.msra.mxu0 0.0
    %257 = vmatprep.subr.mxu0 0.0
    %258 = vmatpush1.msra.mxu0 0.0
    %259 = vmatprep.subr.mxu0 0.0
    %260 = vmatpush1.msra.mxu0 0.0
    %261 = vmatprep.mubr.f32.mxu0 0.0
    %262 = vmatmul.mubr.f32.gmra.mrb[0].mxu0 %v195
    %v263 = vpop.f32.mrb[0].mxu0
    %v264 = vadd.f32 0.0, %v263
    %v265 = vpop.f32.mrb[0].mxu0
    %266 = vdwg.mxu0
    %v268 = vrot.slane %v264, 1
    %v269 = vrot.slane %v264, 2
    %v273 = vadd.f32 %v180, %v264
    %v274 = vadd.f32 %v185, %v268
    %v275 = vadd.f32 %v190, %v269
    %v276 = vtanh.pop %v273
    %v277 = vtanh.pop %v274
    %v278 = vtanh.pop %v275
    %v282 = vrot.slane %v277, 7
    %vm283 = vcmask 1041409
    %v284 = vsel %vm283, %v282, %v276
    %v285 = vrot.slane %v278, 6
    %vm286 = vcmask 1042434
    %v287 = vsel %vm286, %v285, %v284
    %v288 = vsel %vm193, %v287, 0
    %290 = vmatprep.subr.mxu0 0.0
    %291 = vmatpush1.msra.mxu0 %v92
    %292 = vmatprep.subr.mxu0 0.0
    %293 = vmatpush1.msra.mxu0 %v93
    %294 = vmatprep.subr.mxu0 0.0
    %295 = vmatpush1.msra.mxu0 %v94
    %296 = vmatprep.subr.mxu0 0.0
    %297 = vmatpush1.msra.mxu0 %v95
    %298 = vmatprep.subr.mxu0 0.0
    %299 = vmatpush1.msra.mxu0 0.0
    %300 = vmatprep.subr.mxu0 0.0
    %301 = vmatpush1.msra.mxu0 0.0
    %302 = vmatprep.subr.mxu0 0.0
    %303 = vmatpush1.msra.mxu0 0.0
    %304 = vmatprep.subr.mxu0 0.0
    %305 = vmatpush1.msra.mxu0 0.0
    %306 = vmatprep.subr.mxu0 0.0
    %307 = vmatpush1.msra.mxu0 0.0
    %308 = vmatprep.subr.mxu0 0.0
    %309 = vmatpush1.msra.mxu0 0.0
    %310 = vmatprep.subr.mxu0 0.0
    %311 = vmatpush1.msra.mxu0 0.0
    %312 = vmatprep.subr.mxu0 0.0
    %313 = vmatpush1.msra.mxu0 0.0
    %314 = vmatprep.subr.mxu0 0.0
    %315 = vmatpush1.msra.mxu0 0.0
    %316 = vmatprep.subr.mxu0 0.0
    %317 = vmatpush1.msra.mxu0 0.0
    %318 = vmatprep.subr.mxu0 0.0
    %319 = vmatpush1.msra.mxu0 0.0
    %320 = vmatprep.subr.mxu0 0.0
    %321 = vmatpush1.msra.mxu0 0.0
    %322 = vmatprep.subr.mxu0 0.0
    %323 = vmatpush1.msra.mxu0 0.0
    %324 = vmatprep.subr.mxu0 0.0
    %325 = vmatpush1.msra.mxu0 0.0
    %326 = vmatprep.subr.mxu0 0.0
    %327 = vmatpush1.msra.mxu0 0.0
    %328 = vmatprep.subr.mxu0 0.0
    %329 = vmatpush1.msra.mxu0 0.0
    %330 = vmatprep.subr.mxu0 0.0
    %331 = vmatpush1.msra.mxu0 0.0
    %332 = vmatprep.subr.mxu0 0.0
    %333 = vmatpush1.msra.mxu0 0.0
    %334 = vmatprep.subr.mxu0 0.0
    %335 = vmatpush1.msra.mxu0 0.0
    %336 = vmatprep.subr.mxu0 0.0
    %337 = vmatpush1.msra.mxu0 0.0
    %338 = vmatprep.subr.mxu0 0.0
    %339 = vmatpush1.msra.mxu0 0.0
    %340 = vmatprep.subr.mxu0 0.0
    %341 = vmatpush1.msra.mxu0 0.0
    %342 = vmatprep.subr.mxu0 0.0
    %343 = vmatpush1.msra.mxu0 0.0
    %344 = vmatprep.subr.mxu0 0.0
    %345 = vmatpush1.msra.mxu0 0.0
    %346 = vmatprep.subr.mxu0 0.0
    %347 = vmatpush1.msra.mxu0 0.0
    %348 = vmatprep.subr.mxu0 0.0
    %349 = vmatpush1.msra.mxu0 0.0
    %350 = vmatprep.subr.mxu0 0.0
    %351 = vmatpush1.msra.mxu0 0.0
    %352 = vmatprep.subr.mxu0 0.0
    %353 = vmatpush1.msra.mxu0 0.0
    %354 = vmatprep.mubr.f32.mxu0 0.0
    %355 = vmatmul.mubr.f32.gmra.mrb[0].mxu0 %v288
    %v356 = vpop.f32.mrb[0].mxu0
    %v357 = vadd.f32 0.0, %v356
    %v358 = vpop.f32.mrb[0].mxu0
    %359 = vdwg.mxu0
    %v361 = vrot.slane %v357, 7
    %v362 = vrot.slane %v357, 1
    %v366 = vadd.f32 %v180, %v361
    %v367 = vadd.f32 %v185, %v357
    %v368 = vadd.f32 %v190, %v362
    %v369 = vtanh.pop %v366
    %v370 = vtanh.pop %v367
    %v371 = vtanh.pop %v368
    %v375 = vrot.slane %v369, 1
    %v376 = vsel %vm283, %v370, %v375
    %v377 = vrot.slane %v371, 7
    %v378 = vsel %vm286, %v377, %v376
    %v379 = vsel %vm193, %v378, 0
    %381 = vmatprep.subr.mxu0 0.0
    %382 = vmatpush1.msra.mxu0 %v92
    %383 = vmatprep.subr.mxu0 0.0
    %384 = vmatpush1.msra.mxu0 %v93
    %385 = vmatprep.subr.mxu0 0.0
    %386 = vmatpush1.msra.mxu0 %v94
    %387 = vmatprep.subr.mxu0 0.0
    %388 = vmatpush1.msra.mxu0 %v95
    %389 = vmatprep.subr.mxu0 0.0
    %390 = vmatpush1.msra.mxu0 0.0
    %391 = vmatprep.subr.mxu0 0.0
    %392 = vmatpush1.msra.mxu0 0.0
    %393 = vmatprep.subr.mxu0 0.0
    %394 = vmatpush1.msra.mxu0 0.0
    %395 = vmatprep.subr.mxu0 0.0
    %396 = vmatpush1.msra.mxu0 0.0
    %397 = vmatprep.subr.mxu0 0.0
    %398 = vmatpush1.msra.mxu0 0.0
    %399 = vmatprep.subr.mxu0 0.0
    %400 = vmatpush1.msra.mxu0 0.0
    %401 = vmatprep.subr.mxu0 0.0
    %402 = vmatpush1.msra.mxu0 0.0
    %403 = vmatprep.subr.mxu0 0.0
    %404 = vmatpush1.msra.mxu0 0.0
    %405 = vmatprep.subr.mxu0 0.0
    %406 = vmatpush1.msra.mxu0 0.0
    %407 = vmatprep.subr.mxu0 0.0
    %408 = vmatpush1.msra.mxu0 0.0
    %409 = vmatprep.subr.mxu0 0.0
    %410 = vmatpush1.msra.mxu0 0.0
    %411 = vmatprep.subr.mxu0 0.0
    %412 = vmatpush1.msra.mxu0 0.0
    %413 = vmatprep.subr.mxu0 0.0
    %414 = vmatpush1.msra.mxu0 0.0
    %415 = vmatprep.subr.mxu0 0.0
    %416 = vmatpush1.msra.mxu0 0.0
    %417 = vmatprep.subr.mxu0 0.0
    %418 = vmatpush1.msra.mxu0 0.0
    %419 = vmatprep.subr.mxu0 0.0
    %420 = vmatpush1.msra.mxu0 0.0
    %421 = vmatprep.subr.mxu0 0.0
    %422 = vmatpush1.msra.mxu0 0.0
    %423 = vmatprep.subr.mxu0 0.0
    %424 = vmatpush1.msra.mxu0 0.0
    %425 = vmatprep.subr.mxu0 0.0
    %426 = vmatpush1.msra.mxu0 0.0
    %427 = vmatprep.subr.mxu0 0.0
    %428 = vmatpush1.msra.mxu0 0.0
    %429 = vmatprep.subr.mxu0 0.0
    %430 = vmatpush1.msra.mxu0 0.0
    %431 = vmatprep.subr.mxu0 0.0
    %432 = vmatpush1.msra.mxu0 0.0
    %433 = vmatprep.subr.mxu0 0.0
    %434 = vmatpush1.msra.mxu0 0.0
    %435 = vmatprep.subr.mxu0 0.0
    %436 = vmatpush1.msra.mxu0 0.0
    %437 = vmatprep.subr.mxu0 0.0
    %438 = vmatpush1.msra.mxu0 0.0
    %439 = vmatprep.subr.mxu0 0.0
    %440 = vmatpush1.msra.mxu0 0.0
    %441 = vmatprep.subr.mxu0 0.0
    %442 = vmatpush1.msra.mxu0 0.0
    %443 = vmatprep.subr.mxu0 0.0
    %444 = vmatpush1.msra.mxu0 0.0
    %445 = vmatprep.mubr.f32.mxu0 0.0
    %446 = vmatmul.mubr.f32.gmra.mrb[0].mxu0 %v379
    %v447 = vpop.f32.mrb[0].mxu0
    %v448 = vadd.f32 0.0, %v447
    %v449 = vpop.f32.mrb[0].mxu0
    %450 = vdwg.mxu0
    %v452 = vrot.slane %v448, 6
    %v453 = vrot.slane %v448, 7
    %v457 = vadd.f32 %v180, %v452
    %v458 = vadd.f32 %v185, %v453
    %v459 = vadd.f32 %v190, %v448
    %v460 = vtanh.pop %v457
    %v461 = vtanh.pop %v458
    %v462 = vtanh.pop %v459
    %v466 = vrot.slane %v460, 2
    %v467 = vrot.slane %v461, 1
    %v468 = vsel %vm283, %v467, %v466
    %v469 = vsel %vm286, %v462, %v468
    %v470 = vsel %vm193, %v469, 0
    %472 = vmatprep.subr.mxu0 0.0
    %473 = vmatpush1.msra.mxu0 %v92
    %474 = vmatprep.subr.mxu0 0.0
    %475 = vmatpush1.msra.mxu0 %v93
    %476 = vmatprep.subr.mxu0 0.0
    %477 = vmatpush1.msra.mxu0 %v94
    %478 = vmatprep.subr.mxu0 0.0
    %479 = vmatpush1.msra.mxu0 %v95
    %480 = vmatprep.subr.mxu0 0.0
    %481 = vmatpush1.msra.mxu0 0.0
    %482 = vmatprep.subr.mxu0 0.0
    %483 = vmatpush1.msra.mxu0 0.0
    %484 = vmatprep.subr.mxu0 0.0
    %485 = vmatpush1.msra.mxu0 0.0
    %486 = vmatprep.subr.mxu0 0.0
    %487 = vmatpush1.msra.mxu0 0.0
    %488 = vmatprep.subr.mxu0 0.0
    %489 = vmatpush1.msra.mxu0 0.0
    %490 = vmatprep.subr.mxu0 0.0
    %491 = vmatpush1.msra.mxu0 0.0
    %492 = vmatprep.subr.mxu0 0.0
    %493 = vmatpush1.msra.mxu0 0.0
    %494 = vmatprep.subr.mxu0 0.0
    %495 = vmatpush1.msra.mxu0 0.0
    %496 = vmatprep.subr.mxu0 0.0
    %497 = vmatpush1.msra.mxu0 0.0
    %498 = vmatprep.subr.mxu0 0.0
    %499 = vmatpush1.msra.mxu0 0.0
    %500 = vmatprep.subr.mxu0 0.0
    %501 = vmatpush1.msra.mxu0 0.0
    %502 = vmatprep.subr.mxu0 0.0
    %503 = vmatpush1.msra.mxu0 0.0
    %504 = vmatprep.subr.mxu0 0.0
    %505 = vmatpush1.msra.mxu0 0.0
    %506 = vmatprep.subr.mxu0 0.0
    %507 = vmatpush1.msra.mxu0 0.0
    %508 = vmatprep.subr.mxu0 0.0
    %509 = vmatpush1.msra.mxu0 0.0
    %510 = vmatprep.subr.mxu0 0.0
    %511 = vmatpush1.msra.mxu0 0.0
    %512 = vmatprep.subr.mxu0 0.0
    %513 = vmatpush1.msra.mxu0 0.0
    %514 = vmatprep.subr.mxu0 0.0
    %515 = vmatpush1.msra.mxu0 0.0
    %516 = vmatprep.subr.mxu0 0.0
    %517 = vmatpush1.msra.mxu0 0.0
    %518 = vmatprep.subr.mxu0 0.0
    %519 = vmatpush1.msra.mxu0 0.0
    %520 = vmatprep.subr.mxu0 0.0
    %521 = vmatpush1.msra.mxu0 0.0
    %522 = vmatprep.subr.mxu0 0.0
    %523 = vmatpush1.msra.mxu0 0.0
    %524 = vmatprep.subr.mxu0 0.0
    %525 = vmatpush1.msra.mxu0 0.0
    %526 = vmatprep.subr.mxu0 0.0
    %527 = vmatpush1.msra.mxu0 0.0
    %528 = vmatprep.subr.mxu0 0.0
    %529 = vmatpush1.msra.mxu0 0.0
    %530 = vmatprep.subr.mxu0 0.0
    %531 = vmatpush1.msra.mxu0 0.0
    %532 = vmatprep.subr.mxu0 0.0
    %533 = vmatpush1.msra.mxu0 0.0
    %534 = vmatprep.subr.mxu0 0.0
    %535 = vmatpush1.msra.mxu0 0.0
    %536 = vmatprep.mubr.f32.mxu0 0.0
    %537 = vmatmul.mubr.f32.gmra.mrb[0].mxu0 %v470
    %v538 = vpop.f32.mrb[0].mxu0
    %v539 = vadd.f32 0.0, %v538
    %v540 = vpop.f32.mrb[0].mxu0
    %541 = vdwg.mxu0
    %v543 = vrot.slane %v539, 5
    %v544 = vrot.slane %v539, 6
    %v545 = vrot.slane %v539, 7
    %v549 = vadd.f32 %v180, %v543
    %v550 = vadd.f32 %v185, %v544
    %v551 = vadd.f32 %v190, %v545
    %v552 = vtanh.pop %v549
    %v553 = vtanh.pop %v550
    %v554 = vtanh.pop %v551
    %v558 = vrot.slane %v552, 3
    %v559 = vrot.slane %v553, 2
    %v560 = vsel %vm283, %v559, %v558
    %v561 = vrot.slane %v554, 1
    %v562 = vsel %vm286, %v561, %v560
    %v563 = vsel %vm193, %v562, 0
    %565 = vmatprep.subr.mxu0 0.0
    %566 = vmatpush1.msra.mxu0 %v92
    %567 = vmatprep.subr.mxu0 0.0
    %568 = vmatpush1.msra.mxu0 %v93
    %569 = vmatprep.subr.mxu0 0.0
    %570 = vmatpush1.msra.mxu0 %v94
    %571 = vmatprep.subr.mxu0 0.0
    %572 = vmatpush1.msra.mxu0 %v95
    %573 = vmatprep.subr.mxu0 0.0
    %574 = vmatpush1.msra.mxu0 0.0
    %575 = vmatprep.subr.mxu0 0.0
    %576 = vmatpush1.msra.mxu0 0.0
    %577 = vmatprep.subr.mxu0 0.0
    %578 = vmatpush1.msra.mxu0 0.0
    %579 = vmatprep.subr.mxu0 0.0
    %580 = vmatpush1.msra.mxu0 0.0
    %581 = vmatprep.subr.mxu0 0.0
    %582 = vmatpush1.msra.mxu0 0.0
    %583 = vmatprep.subr.mxu0 0.0
    %584 = vmatpush1.msra.mxu0 0.0
    %585 = vmatprep.subr.mxu0 0.0
    %586 = vmatpush1.msra.mxu0 0.0
    %587 = vmatprep.subr.mxu0 0.0
    %588 = vmatpush1.msra.mxu0 0.0
    %589 = vmatprep.subr.mxu0 0.0
    %590 = vmatpush1.msra.mxu0 0.0
    %591 = vmatprep.subr.mxu0 0.0
    %592 = vmatpush1.msra.mxu0 0.0
    %593 = vmatprep.subr.mxu0 0.0
    %594 = vmatpush1.msra.mxu0 0.0
    %595 = vmatprep.subr.mxu0 0.0
    %596 = vmatpush1.msra.mxu0 0.0
    %597 = vmatprep.subr.mxu0 0.0
    %598 = vmatpush1.msra.mxu0 0.0
    %599 = vmatprep.subr.mxu0 0.0
    %600 = vmatpush1.msra.mxu0 0.0
    %601 = vmatprep.subr.mxu0 0.0
    %602 = vmatpush1.msra.mxu0 0.0
    %603 = vmatprep.subr.mxu0 0.0
    %604 = vmatpush1.msra.mxu0 0.0
    %605 = vmatprep.subr.mxu0 0.0
    %606 = vmatpush1.msra.mxu0 0.0
    %607 = vmatprep.subr.mxu0 0.0
    %608 = vmatpush1.msra.mxu0 0.0
    %609 = vmatprep.subr.mxu0 0.0
    %610 = vmatpush1.msra.mxu0 0.0
    %611 = vmatprep.subr.mxu0 0.0
    %612 = vmatpush1.msra.mxu0 0.0
    %613 = vmatprep.subr.mxu0 0.0
    %614 = vmatpush1.msra.mxu0 0.0
    %615 = vmatprep.subr.mxu0 0.0
    %616 = vmatpush1.msra.mxu0 0.0
    %617 = vmatprep.subr.mxu0 0.0
    %618 = vmatpush1.msra.mxu0 0.0
    %619 = vmatprep.subr.mxu0 0.0
    %620 = vmatpush1.msra.mxu0 0.0
    %621 = vmatprep.subr.mxu0 0.0
    %622 = vmatpush1.msra.mxu0 0.0
    %623 = vmatprep.subr.mxu0 0.0
    %624 = vmatpush1.msra.mxu0 0.0
    %625 = vmatprep.subr.mxu0 0.0
    %626 = vmatpush1.msra.mxu0 0.0
    %627 = vmatprep.subr.mxu0 0.0
    %628 = vmatpush1.msra.mxu0 0.0
    %629 = vmatprep.mubr.f32.mxu0 0.0
    %630 = vmatmul.mubr.f32.gmra.mrb[0].mxu0 %v563
    %v631 = vpop.f32.mrb[0].mxu0
    %v632 = vadd.f32 0.0, %v631
    %v633 = vpop.f32.mrb[0].mxu0
    %634 = vdwg.mxu0
    %v636 = vrot.slane %v632, 4
    %v637 = vrot.slane %v632, 5
    %v638 = vrot.slane %v632, 6
    %v642 = vadd.f32 %v180, %v636
    %v643 = vadd.f32 %v185, %v637
    %v644 = vadd.f32 %v190, %v638
    %v645 = vtanh.pop %v642
    %v646 = vtanh.pop %v643
    %v647 = vtanh.pop %v644
    %v651 = vrot.slane %v645, 4
    %v652 = vrot.slane %v646, 3
    %v653 = vsel %vm283, %v652, %v651
    %v654 = vrot.slane %v647, 2
    %v655 = vsel %vm286, %v654, %v653
    %v656 = vsel %vm193, %v655, 0
    %658 = vmatprep.subr.mxu0 0.0
    %659 = vmatpush1.msra.mxu0 %v92
    %660 = vmatprep.subr.mxu0 0.0
    %661 = vmatpush1.msra.mxu0 %v93
    %662 = vmatprep.subr.mxu0 0.0
    %663 = vmatpush1.msra.mxu0 %v94
    %664 = vmatprep.subr.mxu0 0.0
    %665 = vmatpush1.msra.mxu0 %v95
    %666 = vmatprep.subr.mxu0 0.0
    %667 = vmatpush1.msra.mxu0 0.0
    %668 = vmatprep.subr.mxu0 0.0
    %669 = vmatpush1.msra.mxu0 0.0
    %670 = vmatprep.subr.mxu0 0.0
    %671 = vmatpush1.msra.mxu0 0.0
    %672 = vmatprep.subr.mxu0 0.0
    %673 = vmatpush1.msra.mxu0 0.0
    %674 = vmatprep.subr.mxu0 0.0
    %675 = vmatpush1.msra.mxu0 0.0
    %676 = vmatprep.subr.mxu0 0.0
    %677 = vmatpush1.msra.mxu0 0.0
    %678 = vmatprep.subr.mxu0 0.0
    %679 = vmatpush1.msra.mxu0 0.0
    %680 = vmatprep.subr.mxu0 0.0
    %681 = vmatpush1.msra.mxu0 0.0
    %682 = vmatprep.subr.mxu0 0.0
    %683 = vmatpush1.msra.mxu0 0.0
    %684 = vmatprep.subr.mxu0 0.0
    %685 = vmatpush1.msra.mxu0 0.0
    %686 = vmatprep.subr.mxu0 0.0
    %687 = vmatpush1.msra.mxu0 0.0
    %688 = vmatprep.subr.mxu0 0.0
    %689 = vmatpush1.msra.mxu0 0.0
    %690 = vmatprep.subr.mxu0 0.0
    %691 = vmatpush1.msra.mxu0 0.0
    %692 = vmatprep.subr.mxu0 0.0
    %693 = vmatpush1.msra.mxu0 0.0
    %694 = vmatprep.subr.mxu0 0.0
    %695 = vmatpush1.msra.mxu0 0.0
    %696 = vmatprep.subr.mxu0 0.0
    %697 = vmatpush1.msra.mxu0 0.0
    %698 = vmatprep.subr.mxu0 0.0
    %699 = vmatpush1.msra.mxu0 0.0
    %700 = vmatprep.subr.mxu0 0.0
    %701 = vmatpush1.msra.mxu0 0.0
    %702 = vmatprep.subr.mxu0 0.0
    %703 = vmatpush1.msra.mxu0 0.0
    %704 = vmatprep.subr.mxu0 0.0
    %705 = vmatpush1.msra.mxu0 0.0
    %706 = vmatprep.subr.mxu0 0.0
    %707 = vmatpush1.msra.mxu0 0.0
    %708 = vmatprep.subr.mxu0 0.0
    %709 = vmatpush1.msra.mxu0 0.0
    %710 = vmatprep.subr.mxu0 0.0
    %711 = vmatpush1.msra.mxu0 0.0
    %712 = vmatprep.subr.mxu0 0.0
    %713 = vmatpush1.msra.mxu0 0.0
    %714 = vmatprep.subr.mxu0 0.0
    %715 = vmatpush1.msra.mxu0 0.0
    %716 = vmatprep.subr.mxu0 0.0
    %717 = vmatpush1.msra.mxu0 0.0
    %718 = vmatprep.subr.mxu0 0.0
    %719 = vmatpush1.msra.mxu0 0.0
    %720 = vmatprep.subr.mxu0 0.0
    %721 = vmatpush1.msra.mxu0 0.0
    %722 = vmatprep.mubr.f32.mxu0 0.0
    %723 = vmatmul.mubr.f32.gmra.mrb[0].mxu0 %v656
    %v724 = vpop.f32.mrb[0].mxu0
    %v725 = vadd.f32 0.0, %v724
    %v726 = vpop.f32.mrb[0].mxu0
    %727 = vdwg.mxu0
    %v729 = vrot.slane %v725, 3
    %v730 = vrot.slane %v725, 4
    %v731 = vrot.slane %v725, 5
    %v735 = vadd.f32 %v180, %v729
    %v736 = vadd.f32 %v185, %v730
    %v737 = vadd.f32 %v190, %v731
    %v738 = vtanh.pop %v735
    %v739 = vtanh.pop %v736
    %v740 = vtanh.pop %v737
    %v744 = vrot.slane %v738, 5
    %v745 = vrot.slane %v739, 4
    %v746 = vsel %vm283, %v745, %v744
    %v747 = vrot.slane %v740, 3
    %v748 = vsel %vm286, %v747, %v746
    %v749 = vsel %vm193, %v748, 0
    %751 = vmatprep.subr.mxu0 0.0
    %752 = vmatpush1.msra.mxu0 %v92
    %753 = vmatprep.subr.mxu0 0.0
    %754 = vmatpush1.msra.mxu0 %v93
    %755 = vmatprep.subr.mxu0 0.0
    %756 = vmatpush1.msra.mxu0 %v94
    %757 = vmatprep.subr.mxu0 0.0
    %758 = vmatpush1.msra.mxu0 %v95
    %759 = vmatprep.subr.mxu0 0.0
    %760 = vmatpush1.msra.mxu0 0.0
    %761 = vmatprep.subr.mxu0 0.0
    %762 = vmatpush1.msra.mxu0 0.0
    %763 = vmatprep.subr.mxu0 0.0
    %764 = vmatpush1.msra.mxu0 0.0
    %765 = vmatprep.subr.mxu0 0.0
    %766 = vmatpush1.msra.mxu0 0.0
    %767 = vmatprep.subr.mxu0 0.0
    %768 = vmatpush1.msra.mxu0 0.0
    %769 = vmatprep.subr.mxu0 0.0
    %770 = vmatpush1.msra.mxu0 0.0
    %771 = vmatprep.subr.mxu0 0.0
    %772 = vmatpush1.msra.mxu0 0.0
    %773 = vmatprep.subr.mxu0 0.0
    %774 = vmatpush1.msra.mxu0 0.0
    %775 = vmatprep.subr.mxu0 0.0
    %776 = vmatpush1.msra.mxu0 0.0
    %777 = vmatprep.subr.mxu0 0.0
    %778 = vmatpush1.msra.mxu0 0.0
    %779 = vmatprep.subr.mxu0 0.0
    %780 = vmatpush1.msra.mxu0 0.0
    %781 = vmatprep.subr.mxu0 0.0
    %782 = vmatpush1.msra.mxu0 0.0
    %783 = vmatprep.subr.mxu0 0.0
    %784 = vmatpush1.msra.mxu0 0.0
    %785 = vmatprep.subr.mxu0 0.0
    %786 = vmatpush1.msra.mxu0 0.0
    %787 = vmatprep.subr.mxu0 0.0
    %788 = vmatpush1.msra.mxu0 0.0
    %789 = vmatprep.subr.mxu0 0.0
    %790 = vmatpush1.msra.mxu0 0.0
    %791 = vmatprep.subr.mxu0 0.0
    %792 = vmatpush1.msra.mxu0 0.0
    %793 = vmatprep.subr.mxu0 0.0
    %794 = vmatpush1.msra.mxu0 0.0
    %795 = vmatprep.subr.mxu0 0.0
    %796 = vmatpush1.msra.mxu0 0.0
    %797 = vmatprep.subr.mxu0 0.0
    %798 = vmatpush1.msra.mxu0 0.0
    %799 = vmatprep.subr.mxu0 0.0
    %800 = vmatpush1.msra.mxu0 0.0
    %801 = vmatprep.subr.mxu0 0.0
    %802 = vmatpush1.msra.mxu0 0.0
    %803 = vmatprep.subr.mxu0 0.0
    %804 = vmatpush1.msra.mxu0 0.0
    %805 = vmatprep.subr.mxu0 0.0
    %806 = vmatpush1.msra.mxu0 0.0
    %807 = vmatprep.subr.mxu0 0.0
    %808 = vmatpush1.msra.mxu0 0.0
    %809 = vmatprep.subr.mxu0 0.0
    %810 = vmatpush1.msra.mxu0 0.0
    %811 = vmatprep.subr.mxu0 0.0
    %812 = vmatpush1.msra.mxu0 0.0
    %813 = vmatprep.subr.mxu0 0.0
    %814 = vmatpush1.msra.mxu0 0.0
    %815 = vmatprep.mubr.f32.mxu0 0.0
    %816 = vmatmul.mubr.f32.gmra.mrb[0].mxu0 %v749
    %v817 = vpop.f32.mrb[0].mxu0
    %v818 = vadd.f32 0.0, %v817
    %v819 = vpop.f32.mrb[0].mxu0
    %820 = vdwg.mxu0
    %v822 = vrot.slane %v818, 2
    %v823 = vrot.slane %v818, 3
    %v824 = vrot.slane %v818, 4
    %v828 = vadd.f32 %v180, %v822
    %v829 = vadd.f32 %v185, %v823
    %v830 = vadd.f32 %v190, %v824
    %v831 = vtanh.pop %v828
    %v832 = vtanh.pop %v829
    %v833 = vtanh.pop %v830
    %v837 = vrot.slane %v831, 6
    %v838 = vrot.slane %v832, 5
    %v839 = vsel %vm283, %v838, %v837
    %v840 = vrot.slane %v833, 4
    %v841 = vsel %vm286, %v840, %v839
    %v842 = vsel %vm193, %v841, 0
    %844 = vmatprep.subr.mxu0 0.0
    %845 = vmatpush1.msra.mxu0 %v92
    %846 = vmatprep.subr.mxu0 0.0
    %847 = vmatpush1.msra.mxu0 %v93
    %848 = vmatprep.subr.mxu0 0.0
    %849 = vmatpush1.msra.mxu0 %v94
    %850 = vmatprep.subr.mxu0 0.0
    %851 = vmatpush1.msra.mxu0 %v95
    %852 = vmatprep.subr.mxu0 0.0
    %853 = vmatpush1.msra.mxu0 0.0
    %854 = vmatprep.subr.mxu0 0.0
    %855 = vmatpush1.msra.mxu0 0.0
    %856 = vmatprep.subr.mxu0 0.0
    %857 = vmatpush1.msra.mxu0 0.0
    %858 = vmatprep.subr.mxu0 0.0
    %859 = vmatpush1.msra.mxu0 0.0
    %860 = vmatprep.subr.mxu0 0.0
    %861 = vmatpush1.msra.mxu0 0.0
    %862 = vmatprep.subr.mxu0 0.0
    %863 = vmatpush1.msra.mxu0 0.0
    %864 = vmatprep.subr.mxu0 0.0
    %865 = vmatpush1.msra.mxu0 0.0
    %866 = vmatprep.subr.mxu0 0.0
    %867 = vmatpush1.msra.mxu0 0.0
    %868 = vmatprep.subr.mxu0 0.0
    %869 = vmatpush1.msra.mxu0 0.0
    %870 = vmatprep.subr.mxu0 0.0
    %871 = vmatpush1.msra.mxu0 0.0
    %872 = vmatprep.subr.mxu0 0.0
    %873 = vmatpush1.msra.mxu0 0.0
    %874 = vmatprep.subr.mxu0 0.0
    %875 = vmatpush1.msra.mxu0 0.0
    %876 = vmatprep.subr.mxu0 0.0
    %877 = vmatpush1.msra.mxu0 0.0
    %878 = vmatprep.subr.mxu0 0.0
    %879 = vmatpush1.msra.mxu0 0.0
    %880 = vmatprep.subr.mxu0 0.0
    %881 = vmatpush1.msra.mxu0 0.0
    %882 = vmatprep.subr.mxu0 0.0
    %883 = vmatpush1.msra.mxu0 0.0
    %884 = vmatprep.subr.mxu0 0.0
    %885 = vmatpush1.msra.mxu0 0.0
    %886 = vmatprep.subr.mxu0 0.0
    %887 = vmatpush1.msra.mxu0 0.0
    %888 = vmatprep.subr.mxu0 0.0
    %889 = vmatpush1.msra.mxu0 0.0
    %890 = vmatprep.subr.mxu0 0.0
    %891 = vmatpush1.msra.mxu0 0.0
    %892 = vmatprep.subr.mxu0 0.0
    %893 = vmatpush1.msra.mxu0 0.0
    %894 = vmatprep.subr.mxu0 0.0
    %895 = vmatpush1.msra.mxu0 0.0
    %896 = vmatprep.subr.mxu0 0.0
    %897 = vmatpush1.msra.mxu0 0.0
    %898 = vmatprep.subr.mxu0 0.0
    %899 = vmatpush1.msra.mxu0 0.0
    %900 = vmatprep.subr.mxu0 0.0
    %901 = vmatpush1.msra.mxu0 0.0
    %902 = vmatprep.subr.mxu0 0.0
    %903 = vmatpush1.msra.mxu0 0.0
    %904 = vmatprep.subr.mxu0 0.0
    %905 = vmatpush1.msra.mxu0 0.0
    %906 = vmatprep.subr.mxu0 0.0
    %907 = vmatpush1.msra.mxu0 0.0
    %908 = vmatprep.mubr.f32.mxu0 0.0
    %909 = vmatmul.mubr.f32.gmra.mrb[0].mxu0 %v842
    %v910 = vpop.f32.mrb[0].mxu0
    %v911 = vadd.f32 0.0, %v910
    %v912 = vpop.f32.mrb[0].mxu0
    %913 = vdwg.mxu0
    %v915 = vrot.slane %v911, 1
    %v916 = vrot.slane %v911, 2
    %v917 = vrot.slane %v911, 3
    %v921 = vadd.f32 %v180, %v915
    %v922 = vadd.f32 %v185, %v916
    %v923 = vadd.f32 %v190, %v917
    %v924 = vtanh.pop %v921
    %v925 = vtanh.pop %v922
    %v926 = vtanh.pop %v923
    %v930 = vrot.slane %v925, 7
    %v931 = vrot.slane %v926, 6
    %v932 = vsel %vm283, %v931, %v930
    %vm935 = vcmask 261127
    %936 = vst.msk [vmem:[%s10 - $0x7] sm:$0x80] %vm935, %v924
    %vm937 = vcmask 254976
    %938 = vst.msk [vmem:[%s10 + $0x1] sm:$0x3] %vm937, %v932
    %vm939 = vcmask 1040384
    %v940 = vsel %vm939, %v276, %v369
    %v941 = vsel %vm939, %v277, %v370
    %v942 = vsel %vm939, %v278, %v371
    %vm943 = vcmask 1041408
    %v944 = vsel %vm943, %v940, %v460
    %v945 = vsel %vm943, %v941, %v461
    %v946 = vsel %vm943, %v942, %v462
    %vm947 = vcmask 1042432
    %v948 = vsel %vm947, %v944, %v552
    %v949 = vsel %vm947, %v945, %v553
    %v950 = vsel %vm947, %v946, %v554
    %vm951 = vcmask 1043456
    %v952 = vsel %vm951, %v948, %v645
    %v953 = vsel %vm951, %v949, %v646
    %v954 = vsel %vm951, %v950, %v647
    %vm955 = vcmask 1044480
    %v956 = vsel %vm955, %v952, %v738
    %v957 = vsel %vm955, %v953, %v739
    %v958 = vsel %vm955, %v954, %v740
    %vm959 = vcmask 1045504
    %v960 = vsel %vm959, %v956, %v831
    %v961 = vsel %vm959, %v957, %v832
    %v962 = vsel %vm959, %v958, %v833
    %vm963 = vcmask 1046528
    %v964 = vsel %vm963, %v960, %v924
    %v965 = vsel %vm963, %v961, %v925
    %v966 = vsel %vm963, %v962, %v926
    %v967 = vld [vmem:[%s4] sm:$0xff]
    %v968 = vld [vmem:[%s4 + $0x8] sm:$0xff]
    %v969 = vld [vmem:[%s4 + $0x10] sm:$0xff]
    %v970 = vld [vmem:[%s4 + $0x18] sm:$0xff]
    %v971 = vld [vmem:[#allocation6] sm:$0xff]
    %v972 = vld [vmem:[#allocation6 + $0x8] sm:$0xff]
    %v973 = vld [vmem:[#allocation6 + $0x10] sm:$0xff]
    %v974 = vld [vmem:[#allocation6 + $0x18] sm:$0xff]
    %v975 = vld [vmem:[%s6] sm:$0x1]
    %v977 = vlaneseq
    %v978 = vshrl.u32 %v977, 7
    %v979 = vsub.s32 0, %v978
    %v980 = vrot.slane %v975, %v979
    %v983 = vsel %vm193, %v964, 0
    %v986 = vsel %vm193, %v965, 0
    %v989 = vsel %vm193, %v966, 0
    %991 = vmatprep.subr.mxu0 0.0
    %992 = vmatpush1.msra.mxu0 %v967
    %993 = vmatprep.subr.mxu0 0.0
    %994 = vmatpush1.msra.mxu0 %v968
    %995 = vmatprep.subr.mxu0 0.0
    %996 = vmatpush1.msra.mxu0 %v969
    %997 = vmatprep.subr.mxu0 0.0
    %998 = vmatpush1.msra.mxu0 %v970
    %999 = vmatprep.subr.mxu0 0.0
    %1000 = vmatpush1.msra.mxu0 0.0
    %1001 = vmatprep.subr.mxu0 0.0
    %1002 = vmatpush1.msra.mxu0 0.0
    %1003 = vmatprep.subr.mxu0 0.0
    %1004 = vmatpush1.msra.mxu0 0.0
    %1005 = vmatprep.subr.mxu0 0.0
    %1006 = vmatpush1.msra.mxu0 0.0
    %1007 = vmatprep.subr.mxu0 0.0
    %1008 = vmatpush1.msra.mxu0 0.0
    %1009 = vmatprep.subr.mxu0 0.0
    %1010 = vmatpush1.msra.mxu0 0.0
    %1011 = vmatprep.subr.mxu0 0.0
    %1012 = vmatpush1.msra.mxu0 0.0
    %1013 = vmatprep.subr.mxu0 0.0
    %1014 = vmatpush1.msra.mxu0 0.0
    %1015 = vmatprep.subr.mxu0 0.0
    %1016 = vmatpush1.msra.mxu0 0.0
    %1017 = vmatprep.subr.mxu0 0.0
    %1018 = vmatpush1.msra.mxu0 0.0
    %1019 = vmatprep.subr.mxu0 0.0
    %1020 = vmatpush1.msra.mxu0 0.0
    %1021 = vmatprep.subr.mxu0 0.0
    %1022 = vmatpush1.msra.mxu0 0.0
    %1023 = vmatprep.subr.mxu0 0.0
    %1024 = vmatpush1.msra.mxu0 0.0
    %1025 = vmatprep.subr.mxu0 0.0
    %1026 = vmatpush1.msra.mxu0 0.0
    %1027 = vmatprep.subr.mxu0 0.0
    %1028 = vmatpush1.msra.mxu0 0.0
    %1029 = vmatprep.subr.mxu0 0.0
    %1030 = vmatpush1.msra.mxu0 0.0
    %1031 = vmatprep.subr.mxu0 0.0
    %1032 = vmatpush1.msra.mxu0 0.0
    %1033 = vmatprep.subr.mxu0 0.0
    %1034 = vmatpush1.msra.mxu0 0.0
    %1035 = vmatprep.subr.mxu0 0.0
    %1036 = vmatpush1.msra.mxu0 0.0
    %1037 = vmatprep.subr.mxu0 0.0
    %1038 = vmatpush1.msra.mxu0 0.0
    %1039 = vmatprep.subr.mxu0 0.0
    %1040 = vmatpush1.msra.mxu0 0.0
    %1041 = vmatprep.subr.mxu0 0.0
    %1042 = vmatpush1.msra.mxu0 0.0
    %1043 = vmatprep.subr.mxu0 0.0
    %1044 = vmatpush1.msra.mxu0 0.0
    %1045 = vmatprep.subr.mxu0 0.0
    %1046 = vmatpush1.msra.mxu0 0.0
    %1047 = vmatprep.subr.mxu0 0.0
    %1048 = vmatpush1.msra.mxu0 0.0
    %1049 = vmatprep.subr.mxu0 0.0
    %1050 = vmatpush1.msra.mxu0 0.0
    %1051 = vmatprep.subr.mxu0 0.0
    %1052 = vmatpush1.msra.mxu0 0.0
    %1053 = vmatprep.subr.mxu0 0.0
    %1054 = vmatpush1.msra.mxu0 0.0
    %1055 = vmatprep.mubr.f32.mxu0 0.0
    %1056 = vmatmul.mubr.f32.gmra.mrb[0].mxu0 %v983
    %v1057 = vpop.f32.mrb[0].mxu0
    %v1058 = vadd.f32 %v980, %v1057
    %v1059 = vpop.f32.mrb[0].mxu0
    %1060 = vmatprep.mubr.f32.mxu0 0.0
    %1061 = vmatmul.mubr.f32.gmra.mrb[0].mxu0 %v986
    %v1062 = vpop.f32.mrb[0].mxu0
    %v1063 = vadd.f32 %v980, %v1062
    %v1064 = vpop.f32.mrb[0].mxu0
    %1065 = vmatprep.mubr.f32.mxu0 0.0
    %1066 = vmatmul.mubr.f32.gmra.mrb[0].mxu0 %v989
    %v1067 = vpop.f32.mrb[0].mxu0
    %v1068 = vadd.f32 %v980, %v1067
    %v1069 = vpop.f32.mrb[0].mxu0
    %1070 = vdwg.mxu0
    %1071 = vmatprep.subr.mxu0 0.0
    %1072 = vmatpush1.msra.mxu0 %v971
    %1073 = vmatprep.subr.mxu0 0.0
    %1074 = vmatpush1.msra.mxu0 %v972
    %1075 = vmatprep.subr.mxu0 0.0
    %1076 = vmatpush1.msra.mxu0 %v973
    %1077 = vmatprep.subr.mxu0 0.0
    %1078 = vmatpush1.msra.mxu0 %v974
    %1079 = vmatprep.subr.mxu0 0.0
    %1080 = vmatpush1.msra.mxu0 0.0
    %1081 = vmatprep.subr.mxu0 0.0
    %1082 = vmatpush1.msra.mxu0 0.0
    %1083 = vmatprep.subr.mxu0 0.0
    %1084 = vmatpush1.msra.mxu0 0.0
    %1085 = vmatprep.subr.mxu0 0.0
    %1086 = vmatpush1.msra.mxu0 0.0
    %1087 = vmatprep.subr.mxu0 0.0
    %1088 = vmatpush1.msra.mxu0 0.0
    %1089 = vmatprep.subr.mxu0 0.0
    %1090 = vmatpush1.msra.mxu0 0.0
    %1091 = vmatprep.subr.mxu0 0.0
    %1092 = vmatpush1.msra.mxu0 0.0
    %1093 = vmatprep.subr.mxu0 0.0
    %1094 = vmatpush1.msra.mxu0 0.0
    %1095 = vmatprep.subr.mxu0 0.0
    %1096 = vmatpush1.msra.mxu0 0.0
    %1097 = vmatprep.subr.mxu0 0.0
    %1098 = vmatpush1.msra.mxu0 0.0
    %1099 = vmatprep.subr.mxu0 0.0
    %1100 = vmatpush1.msra.mxu0 0.0
    %1101 = vmatprep.subr.mxu0 0.0
    %1102 = vmatpush1.msra.mxu0 0.0
    %1103 = vmatprep.subr.mxu0 0.0
    %1104 = vmatpush1.msra.mxu0 0.0
    %1105 = vmatprep.subr.mxu0 0.0
    %1106 = vmatpush1.msra.mxu0 0.0
    %1107 = vmatprep.subr.mxu0 0.0
    %1108 = vmatpush1.msra.mxu0 0.0
    %1109 = vmatprep.subr.mxu0 0.0
    %1110 = vmatpush1.msra.mxu0 0.0
    %1111 = vmatprep.subr.mxu0 0.0
    %1112 = vmatpush1.msra.mxu0 0.0
    %1113 = vmatprep.subr.mxu0 0.0
    %1114 = vmatpush1.msra.mxu0 0.0
    %1115 = vmatprep.subr.mxu0 0.0
    %1116 = vmatpush1.msra.mxu0 0.0
    %1117 = vmatprep.subr.mxu0 0.0
    %1118 = vmatpush1.msra.mxu0 0.0
    %1119 = vmatprep.subr.mxu0 0.0
    %1120 = vmatpush1.msra.mxu0 0.0
    %1121 = vmatprep.subr.mxu0 0.0
    %1122 = vmatpush1.msra.mxu0 0.0
    %1123 = vmatprep.subr.mxu0 0.0
    %1124 = vmatpush1.msra.mxu0 0.0
    %1125 = vmatprep.subr.mxu0 0.0
    %1126 = vmatpush1.msra.mxu0 0.0
    %1127 = vmatprep.subr.mxu0 0.0
    %1128 = vmatpush1.msra.mxu0 0.0
    %1129 = vmatprep.subr.mxu0 0.0
    %1130 = vmatpush1.msra.mxu0 0.0
    %1131 = vmatprep.subr.mxu0 0.0
    %1132 = vmatpush1.msra.mxu0 0.0
    %1133 = vmatprep.subr.mxu0 0.0
    %1134 = vmatpush1.msra.mxu0 0.0
    %1135 = vmatprep.mubr.f32.mxu0 0.0
    %1136 = vmatmul.mubr.f32.gmra.mrb[0].mxu0 %v195
    %v1137 = vpop.f32.mrb[0].mxu0
    %v1138 = vadd.f32 0.0, %v1137
    %v1139 = vpop.f32.mrb[0].mxu0
    %1140 = vdwg.mxu0
    %v1142 = vrot.slane %v1138, 1
    %v1143 = vrot.slane %v1138, 2
    %v1147 = vadd.f32 %v1058, %v1138
    %v1148 = vadd.f32 %v1063, %v1142
    %v1149 = vadd.f32 %v1068, %v1143
    %v1150 = vtanh.pop %v1147
    %v1151 = vtanh.pop %v1148
    %v1152 = vtanh.pop %v1149
    %v1156 = vrot.slane %v1151, 7
    %v1157 = vsel %vm283, %v1156, %v1150
    %v1158 = vrot.slane %v1152, 6
    %v1159 = vsel %vm286, %v1158, %v1157
    %v1160 = vsel %vm193, %v1159, 0
    %1162 = vmatprep.subr.mxu0 0.0
    %1163 = vmatpush1.msra.mxu0 %v971
    %1164 = vmatprep.subr.mxu0 0.0
    %1165 = vmatpush1.msra.mxu0 %v972
    %1166 = vmatprep.subr.mxu0 0.0
    %1167 = vmatpush1.msra.mxu0 %v973
    %1168 = vmatprep.subr.mxu0 0.0
    %1169 = vmatpush1.msra.mxu0 %v974
    %1170 = vmatprep.subr.mxu0 0.0
    %1171 = vmatpush1.msra.mxu0 0.0
    %1172 = vmatprep.subr.mxu0 0.0
    %1173 = vmatpush1.msra.mxu0 0.0
    %1174 = vmatprep.subr.mxu0 0.0
    %1175 = vmatpush1.msra.mxu0 0.0
    %1176 = vmatprep.subr.mxu0 0.0
    %1177 = vmatpush1.msra.mxu0 0.0
    %1178 = vmatprep.subr.mxu0 0.0
    %1179 = vmatpush1.msra.mxu0 0.0
    %1180 = vmatprep.subr.mxu0 0.0
    %1181 = vmatpush1.msra.mxu0 0.0
    %1182 = vmatprep.subr.mxu0 0.0
    %1183 = vmatpush1.msra.mxu0 0.0
    %1184 = vmatprep.subr.mxu0 0.0
    %1185 = vmatpush1.msra.mxu0 0.0
    %1186 = vmatprep.subr.mxu0 0.0
    %1187 = vmatpush1.msra.mxu0 0.0
    %1188 = vmatprep.subr.mxu0 0.0
    %1189 = vmatpush1.msra.mxu0 0.0
    %1190 = vmatprep.subr.mxu0 0.0
    %1191 = vmatpush1.msra.mxu0 0.0
    %1192 = vmatprep.subr.mxu0 0.0
    %1193 = vmatpush1.msra.mxu0 0.0
    %1194 = vmatprep.subr.mxu0 0.0
    %1195 = vmatpush1.msra.mxu0 0.0
    %1196 = vmatprep.subr.mxu0 0.0
    %1197 = vmatpush1.msra.mxu0 0.0
    %1198 = vmatprep.subr.mxu0 0.0
    %1199 = vmatpush1.msra.mxu0 0.0
    %1200 = vmatprep.subr.mxu0 0.0
    %1201 = vmatpush1.msra.mxu0 0.0
    %1202 = vmatprep.subr.mxu0 0.0
    %1203 = vmatpush1.msra.mxu0 0.0
    %1204 = vmatprep.subr.mxu0 0.0
    %1205 = vmatpush1.msra.mxu0 0.0
    %1206 = vmatprep.subr.mxu0 0.0
    %1207 = vmatpush1.msra.mxu0 0.0
    %1208 = vmatprep.subr.mxu0 0.0
    %1209 = vmatpush1.msra.mxu0 0.0
    %1210 = vmatprep.subr.mxu0 0.0
    %1211 = vmatpush1.msra.mxu0 0.0
    %1212 = vmatprep.subr.mxu0 0.0
    %1213 = vmatpush1.msra.mxu0 0.0
    %1214 = vmatprep.subr.mxu0 0.0
    %1215 = vmatpush1.msra.mxu0 0.0
    %1216 = vmatprep.subr.mxu0 0.0
    %1217 = vmatpush1.msra.mxu0 0.0
    %1218 = vmatprep.subr.mxu0 0.0
    %1219 = vmatpush1.msra.mxu0 0.0
    %1220 = vmatprep.subr.mxu0 0.0
    %1221 = vmatpush1.msra.mxu0 0.0
    %1222 = vmatprep.subr.mxu0 0.0
    %1223 = vmatpush1.msra.mxu0 0.0
    %1224 = vmatprep.subr.mxu0 0.0
    %1225 = vmatpush1.msra.mxu0 0.0
    %1226 = vmatprep.mubr.f32.mxu0 0.0
    %1227 = vmatmul.mubr.f32.gmra.mrb[0].mxu0 %v1160
    %v1228 = vpop.f32.mrb[0].mxu0
    %v1229 = vadd.f32 0.0, %v1228
    %v1230 = vpop.f32.mrb[0].mxu0
    %1231 = vdwg.mxu0
    %v1233 = vrot.slane %v1229, 7
    %v1234 = vrot.slane %v1229, 1
    %v1238 = vadd.f32 %v1058, %v1233
    %v1239 = vadd.f32 %v1063, %v1229
    %v1240 = vadd.f32 %v1068, %v1234
    %v1241 = vtanh.pop %v1238
    %v1242 = vtanh.pop %v1239
    %v1243 = vtanh.pop %v1240
    %v1247 = vrot.slane %v1241, 1
    %v1248 = vsel %vm283, %v1242, %v1247
    %v1249 = vrot.slane %v1243, 7
    %v1250 = vsel %vm286, %v1249, %v1248
    %v1251 = vsel %vm193, %v1250, 0
    %1253 = vmatprep.subr.mxu0 0.0
    %1254 = vmatpush1.msra.mxu0 %v971
    %1255 = vmatprep.subr.mxu0 0.0
    %1256 = vmatpush1.msra.mxu0 %v972
    %1257 = vmatprep.subr.mxu0 0.0
    %1258 = vmatpush1.msra.mxu0 %v973
    %1259 = vmatprep.subr.mxu0 0.0
    %1260 = vmatpush1.msra.mxu0 %v974
    %1261 = vmatprep.subr.mxu0 0.0
    %1262 = vmatpush1.msra.mxu0 0.0
    %1263 = vmatprep.subr.mxu0 0.0
    %1264 = vmatpush1.msra.mxu0 0.0
    %1265 = vmatprep.subr.mxu0 0.0
    %1266 = vmatpush1.msra.mxu0 0.0
    %1267 = vmatprep.subr.mxu0 0.0
    %1268 = vmatpush1.msra.mxu0 0.0
    %1269 = vmatprep.subr.mxu0 0.0
    %1270 = vmatpush1.msra.mxu0 0.0
    %1271 = vmatprep.subr.mxu0 0.0
    %1272 = vmatpush1.msra.mxu0 0.0
    %1273 = vmatprep.subr.mxu0 0.0
    %1274 = vmatpush1.msra.mxu0 0.0
    %1275 = vmatprep.subr.mxu0 0.0
    %1276 = vmatpush1.msra.mxu0 0.0
    %1277 = vmatprep.subr.mxu0 0.0
    %1278 = vmatpush1.msra.mxu0 0.0
    %1279 = vmatprep.subr.mxu0 0.0
    %1280 = vmatpush1.msra.mxu0 0.0
    %1281 = vmatprep.subr.mxu0 0.0
    %1282 = vmatpush1.msra.mxu0 0.0
    %1283 = vmatprep.subr.mxu0 0.0
    %1284 = vmatpush1.msra.mxu0 0.0
    %1285 = vmatprep.subr.mxu0 0.0
    %1286 = vmatpush1.msra.mxu0 0.0
    %1287 = vmatprep.subr.mxu0 0.0
    %1288 = vmatpush1.msra.mxu0 0.0
    %1289 = vmatprep.subr.mxu0 0.0
    %1290 = vmatpush1.msra.mxu0 0.0
    %1291 = vmatprep.subr.mxu0 0.0
    %1292 = vmatpush1.msra.mxu0 0.0
    %1293 = vmatprep.subr.mxu0 0.0
    %1294 = vmatpush1.msra.mxu0 0.0
    %1295 = vmatprep.subr.mxu0 0.0
    %1296 = vmatpush1.msra.mxu0 0.0
    %1297 = vmatprep.subr.mxu0 0.0
    %1298 = vmatpush1.msra.mxu0 0.0
    %1299 = vmatprep.subr.mxu0 0.0
    %1300 = vmatpush1.msra.mxu0 0.0
    %1301 = vmatprep.subr.mxu0 0.0
    %1302 = vmatpush1.msra.mxu0 0.0
    %1303 = vmatprep.subr.mxu0 0.0
    %1304 = vmatpush1.msra.mxu0 0.0
    %1305 = vmatprep.subr.mxu0 0.0
    %1306 = vmatpush1.msra.mxu0 0.0
    %1307 = vmatprep.subr.mxu0 0.0
    %1308 = vmatpush1.msra.mxu0 0.0
    %1309 = vmatprep.subr.mxu0 0.0
    %1310 = vmatpush1.msra.mxu0 0.0
    %1311 = vmatprep.subr.mxu0 0.0
    %1312 = vmatpush1.msra.mxu0 0.0
    %1313 = vmatprep.subr.mxu0 0.0
    %1314 = vmatpush1.msra.mxu0 0.0
    %1315 = vmatprep.subr.mxu0 0.0
    %1316 = vmatpush1.msra.mxu0 0.0
    %1317 = vmatprep.mubr.f32.mxu0 0.0
    %1318 = vmatmul.mubr.f32.gmra.mrb[0].mxu0 %v1251
    %v1319 = vpop.f32.mrb[0].mxu0
    %v1320 = vadd.f32 0.0, %v1319
    %v1321 = vpop.f32.mrb[0].mxu0
    %1322 = vdwg.mxu0
    %v1324 = vrot.slane %v1320, 6
    %v1325 = vrot.slane %v1320, 7
    %v1329 = vadd.f32 %v1058, %v1324
    %v1330 = vadd.f32 %v1063, %v1325
    %v1331 = vadd.f32 %v1068, %v1320
    %v1332 = vtanh.pop %v1329
    %v1333 = vtanh.pop %v1330
    %v1334 = vtanh.pop %v1331
    %v1338 = vrot.slane %v1332, 2
    %v1339 = vrot.slane %v1333, 1
    %v1340 = vsel %vm283, %v1339, %v1338
    %v1341 = vsel %vm286, %v1334, %v1340
    %v1342 = vsel %vm193, %v1341, 0
    %1344 = vmatprep.subr.mxu0 0.0
    %1345 = vmatpush1.msra.mxu0 %v971
    %1346 = vmatprep.subr.mxu0 0.0
    %1347 = vmatpush1.msra.mxu0 %v972
    %1348 = vmatprep.subr.mxu0 0.0
    %1349 = vmatpush1.msra.mxu0 %v973
    %1350 = vmatprep.subr.mxu0 0.0
    %1351 = vmatpush1.msra.mxu0 %v974
    %1352 = vmatprep.subr.mxu0 0.0
    %1353 = vmatpush1.msra.mxu0 0.0
    %1354 = vmatprep.subr.mxu0 0.0
    %1355 = vmatpush1.msra.mxu0 0.0
    %1356 = vmatprep.subr.mxu0 0.0
    %1357 = vmatpush1.msra.mxu0 0.0
    %1358 = vmatprep.subr.mxu0 0.0
    %1359 = vmatpush1.msra.mxu0 0.0
    %1360 = vmatprep.subr.mxu0 0.0
    %1361 = vmatpush1.msra.mxu0 0.0
    %1362 = vmatprep.subr.mxu0 0.0
    %1363 = vmatpush1.msra.mxu0 0.0
    %1364 = vmatprep.subr.mxu0 0.0
    %1365 = vmatpush1.msra.mxu0 0.0
    %1366 = vmatprep.subr.mxu0 0.0
    %1367 = vmatpush1.msra.mxu0 0.0
    %1368 = vmatprep.subr.mxu0 0.0
    %1369 = vmatpush1.msra.mxu0 0.0
    %1370 = vmatprep.subr.mxu0 0.0
    %1371 = vmatpush1.msra.mxu0 0.0
    %1372 = vmatprep.subr.mxu0 0.0
    %1373 = vmatpush1.msra.mxu0 0.0
    %1374 = vmatprep.subr.mxu0 0.0
    %1375 = vmatpush1.msra.mxu0 0.0
    %1376 = vmatprep.subr.mxu0 0.0
    %1377 = vmatpush1.msra.mxu0 0.0
    %1378 = vmatprep.subr.mxu0 0.0
    %1379 = vmatpush1.msra.mxu0 0.0
    %1380 = vmatprep.subr.mxu0 0.0
    %1381 = vmatpush1.msra.mxu0 0.0
    %1382 = vmatprep.subr.mxu0 0.0
    %1383 = vmatpush1.msra.mxu0 0.0
    %1384 = vmatprep.subr.mxu0 0.0
    %1385 = vmatpush1.msra.mxu0 0.0
    %1386 = vmatprep.subr.mxu0 0.0
    %1387 = vmatpush1.msra.mxu0 0.0
    %1388 = vmatprep.subr.mxu0 0.0
    %1389 = vmatpush1.msra.mxu0 0.0
    %1390 = vmatprep.subr.mxu0 0.0
    %1391 = vmatpush1.msra.mxu0 0.0
    %1392 = vmatprep.subr.mxu0 0.0
    %1393 = vmatpush1.msra.mxu0 0.0
    %1394 = vmatprep.subr.mxu0 0.0
    %1395 = vmatpush1.msra.mxu0 0.0
    %1396 = vmatprep.subr.mxu0 0.0
    %1397 = vmatpush1.msra.mxu0 0.0
    %1398 = vmatprep.subr.mxu0 0.0
    %1399 = vmatpush1.msra.mxu0 0.0
    %1400 = vmatprep.subr.mxu0 0.0
    %1401 = vmatpush1.msra.mxu0 0.0
    %1402 = vmatprep.subr.mxu0 0.0
    %1403 = vmatpush1.msra.mxu0 0.0
    %1404 = vmatprep.subr.mxu0 0.0
    %1405 = vmatpush1.msra.mxu0 0.0
    %1406 = vmatprep.subr.mxu0 0.0
    %1407 = vmatpush1.msra.mxu0 0.0
    %1408 = vmatprep.mubr.f32.mxu0 0.0
    %1409 = vmatmul.mubr.f32.gmra.mrb[0].mxu0 %v1342
    %v1410 = vpop.f32.mrb[0].mxu0
    %v1411 = vadd.f32 0.0, %v1410
    %v1412 = vpop.f32.mrb[0].mxu0
    %1413 = vdwg.mxu0
    %v1415 = vrot.slane %v1411, 5
    %v1416 = vrot.slane %v1411, 6
    %v1417 = vrot.slane %v1411, 7
    %v1421 = vadd.f32 %v1058, %v1415
    %v1422 = vadd.f32 %v1063, %v1416
    %v1423 = vadd.f32 %v1068, %v1417
    %v1424 = vtanh.pop %v1421
    %v1425 = vtanh.pop %v1422
    %v1426 = vtanh.pop %v1423
    %v1430 = vrot.slane %v1424, 3
    %v1431 = vrot.slane %v1425, 2
    %v1432 = vsel %vm283, %v1431, %v1430
    %v1433 = vrot.slane %v1426, 1
    %v1434 = vsel %vm286, %v1433, %v1432
    %v1435 = vsel %vm193, %v1434, 0
    %1437 = vmatprep.subr.mxu0 0.0
    %1438 = vmatpush1.msra.mxu0 %v971
    %1439 = vmatprep.subr.mxu0 0.0
    %1440 = vmatpush1.msra.mxu0 %v972
    %1441 = vmatprep.subr.mxu0 0.0
    %1442 = vmatpush1.msra.mxu0 %v973
    %1443 = vmatprep.subr.mxu0 0.0
    %1444 = vmatpush1.msra.mxu0 %v974
    %1445 = vmatprep.subr.mxu0 0.0
    %1446 = vmatpush1.msra.mxu0 0.0
    %1447 = vmatprep.subr.mxu0 0.0
    %1448 = vmatpush1.msra.mxu0 0.0
    %1449 = vmatprep.subr.mxu0 0.0
    %1450 = vmatpush1.msra.mxu0 0.0
    %1451 = vmatprep.subr.mxu0 0.0
    %1452 = vmatpush1.msra.mxu0 0.0
    %1453 = vmatprep.subr.mxu0 0.0
    %1454 = vmatpush1.msra.mxu0 0.0
    %1455 = vmatprep.subr.mxu0 0.0
    %1456 = vmatpush1.msra.mxu0 0.0
    %1457 = vmatprep.subr.mxu0 0.0
    %1458 = vmatpush1.msra.mxu0 0.0
    %1459 = vmatprep.subr.mxu0 0.0
    %1460 = vmatpush1.msra.mxu0 0.0
    %1461 = vmatprep.subr.mxu0 0.0
    %1462 = vmatpush1.msra.mxu0 0.0
    %1463 = vmatprep.subr.mxu0 0.0
    %1464 = vmatpush1.msra.mxu0 0.0
    %1465 = vmatprep.subr.mxu0 0.0
    %1466 = vmatpush1.msra.mxu0 0.0
    %1467 = vmatprep.subr.mxu0 0.0
    %1468 = vmatpush1.msra.mxu0 0.0
    %1469 = vmatprep.subr.mxu0 0.0
    %1470 = vmatpush1.msra.mxu0 0.0
    %1471 = vmatprep.subr.mxu0 0.0
    %1472 = vmatpush1.msra.mxu0 0.0
    %1473 = vmatprep.subr.mxu0 0.0
    %1474 = vmatpush1.msra.mxu0 0.0
    %1475 = vmatprep.subr.mxu0 0.0
    %1476 = vmatpush1.msra.mxu0 0.0
    %1477 = vmatprep.subr.mxu0 0.0
    %1478 = vmatpush1.msra.mxu0 0.0
    %1479 = vmatprep.subr.mxu0 0.0
    %1480 = vmatpush1.msra.mxu0 0.0
    %1481 = vmatprep.subr.mxu0 0.0
    %1482 = vmatpush1.msra.mxu0 0.0
    %1483 = vmatprep.subr.mxu0 0.0
    %1484 = vmatpush1.msra.mxu0 0.0
    %1485 = vmatprep.subr.mxu0 0.0
    %1486 = vmatpush1.msra.mxu0 0.0
    %1487 = vmatprep.subr.mxu0 0.0
    %1488 = vmatpush1.msra.mxu0 0.0
    %1489 = vmatprep.subr.mxu0 0.0
    %1490 = vmatpush1.msra.mxu0 0.0
    %1491 = vmatprep.subr.mxu0 0.0
    %1492 = vmatpush1.msra.mxu0 0.0
    %1493 = vmatprep.subr.mxu0 0.0
    %1494 = vmatpush1.msra.mxu0 0.0
    %1495 = vmatprep.subr.mxu0 0.0
    %1496 = vmatpush1.msra.mxu0 0.0
    %1497 = vmatprep.subr.mxu0 0.0
    %1498 = vmatpush1.msra.mxu0 0.0
    %1499 = vmatprep.subr.mxu0 0.0
    %1500 = vmatpush1.msra.mxu0 0.0
    %1501 = vmatprep.mubr.f32.mxu0 0.0
    %1502 = vmatmul.mubr.f32.gmra.mrb[0].mxu0 %v1435
    %v1503 = vpop.f32.mrb[0].mxu0
    %v1504 = vadd.f32 0.0, %v1503
    %v1505 = vpop.f32.mrb[0].mxu0
    %1506 = vdwg.mxu0
    %v1508 = vrot.slane %v1504, 4
    %v1509 = vrot.slane %v1504, 5
    %v1510 = vrot.slane %v1504, 6
    %v1514 = vadd.f32 %v1058, %v1508
    %v1515 = vadd.f32 %v1063, %v1509
    %v1516 = vadd.f32 %v1068, %v1510
    %v1517 = vtanh.pop %v1514
    %v1518 = vtanh.pop %v1515
    %v1519 = vtanh.pop %v1516
    %v1523 = vrot.slane %v1517, 4
    %v1524 = vrot.slane %v1518, 3
    %v1525 = vsel %vm283, %v1524, %v1523
    %v1526 = vrot.slane %v1519, 2
    %v1527 = vsel %vm286, %v1526, %v1525
    %v1528 = vsel %vm193, %v1527, 0
    %1530 = vmatprep.subr.mxu0 0.0
    %1531 = vmatpush1.msra.mxu0 %v971
    %1532 = vmatprep.subr.mxu0 0.0
    %1533 = vmatpush1.msra.mxu0 %v972
    %1534 = vmatprep.subr.mxu0 0.0
    %1535 = vmatpush1.msra.mxu0 %v973
    %1536 = vmatprep.subr.mxu0 0.0
    %1537 = vmatpush1.msra.mxu0 %v974
    %1538 = vmatprep.subr.mxu0 0.0
    %1539 = vmatpush1.msra.mxu0 0.0
    %1540 = vmatprep.subr.mxu0 0.0
    %1541 = vmatpush1.msra.mxu0 0.0
    %1542 = vmatprep.subr.mxu0 0.0
    %1543 = vmatpush1.msra.mxu0 0.0
    %1544 = vmatprep.subr.mxu0 0.0
    %1545 = vmatpush1.msra.mxu0 0.0
    %1546 = vmatprep.subr.mxu0 0.0
    %1547 = vmatpush1.msra.mxu0 0.0
    %1548 = vmatprep.subr.mxu0 0.0
    %1549 = vmatpush1.msra.mxu0 0.0
    %1550 = vmatprep.subr.mxu0 0.0
    %1551 = vmatpush1.msra.mxu0 0.0
    %1552 = vmatprep.subr.mxu0 0.0
    %1553 = vmatpush1.msra.mxu0 0.0
    %1554 = vmatprep.subr.mxu0 0.0
    %1555 = vmatpush1.msra.mxu0 0.0
    %1556 = vmatprep.subr.mxu0 0.0
    %1557 = vmatpush1.msra.mxu0 0.0
    %1558 = vmatprep.subr.mxu0 0.0
    %1559 = vmatpush1.msra.mxu0 0.0
    %1560 = vmatprep.subr.mxu0 0.0
    %1561 = vmatpush1.msra.mxu0 0.0
    %1562 = vmatprep.subr.mxu0 0.0
    %1563 = vmatpush1.msra.mxu0 0.0
    %1564 = vmatprep.subr.mxu0 0.0
    %1565 = vmatpush1.msra.mxu0 0.0
    %1566 = vmatprep.subr.mxu0 0.0
    %1567 = vmatpush1.msra.mxu0 0.0
    %1568 = vmatprep.subr.mxu0 0.0
    %1569 = vmatpush1.msra.mxu0 0.0
    %1570 = vmatprep.subr.mxu0 0.0
    %1571 = vmatpush1.msra.mxu0 0.0
    %1572 = vmatprep.subr.mxu0 0.0
    %1573 = vmatpush1.msra.mxu0 0.0
    %1574 = vmatprep.subr.mxu0 0.0
    %1575 = vmatpush1.msra.mxu0 0.0
    %1576 = vmatprep.subr.mxu0 0.0
    %1577 = vmatpush1.msra.mxu0 0.0
    %1578 = vmatprep.subr.mxu0 0.0
    %1579 = vmatpush1.msra.mxu0 0.0
    %1580 = vmatprep.subr.mxu0 0.0
    %1581 = vmatpush1.msra.mxu0 0.0
    %1582 = vmatprep.subr.mxu0 0.0
    %1583 = vmatpush1.msra.mxu0 0.0
    %1584 = vmatprep.subr.mxu0 0.0
    %1585 = vmatpush1.msra.mxu0 0.0
    %1586 = vmatprep.subr.mxu0 0.0
    %1587 = vmatpush1.msra.mxu0 0.0
    %1588 = vmatprep.subr.mxu0 0.0
    %1589 = vmatpush1.msra.mxu0 0.0
    %1590 = vmatprep.subr.mxu0 0.0
    %1591 = vmatpush1.msra.mxu0 0.0
    %1592 = vmatprep.subr.mxu0 0.0
    %1593 = vmatpush1.msra.mxu0 0.0
    %1594 = vmatprep.mubr.f32.mxu0 0.0
    %1595 = vmatmul.mubr.f32.gmra.mrb[0].mxu0 %v1528
    %v1596 = vpop.f32.mrb[0].mxu0
    %v1597 = vadd.f32 0.0, %v1596
    %v1598 = vpop.f32.mrb[0].mxu0
    %1599 = vdwg.mxu0
    %v1601 = vrot.slane %v1597, 3
    %v1602 = vrot.slane %v1597, 4
    %v1603 = vrot.slane %v1597, 5
    %v1607 = vadd.f32 %v1058, %v1601
    %v1608 = vadd.f32 %v1063, %v1602
    %v1609 = vadd.f32 %v1068, %v1603
    %v1610 = vtanh.pop %v1607
    %v1611 = vtanh.pop %v1608
    %v1612 = vtanh.pop %v1609
    %v1616 = vrot.slane %v1610, 5
    %v1617 = vrot.slane %v1611, 4
    %v1618 = vsel %vm283, %v1617, %v1616
    %v1619 = vrot.slane %v1612, 3
    %v1620 = vsel %vm286, %v1619, %v1618
    %v1621 = vsel %vm193, %v1620, 0
    %1623 = vmatprep.subr.mxu0 0.0
    %1624 = vmatpush1.msra.mxu0 %v971
    %1625 = vmatprep.subr.mxu0 0.0
    %1626 = vmatpush1.msra.mxu0 %v972
    %1627 = vmatprep.subr.mxu0 0.0
    %1628 = vmatpush1.msra.mxu0 %v973
    %1629 = vmatprep.subr.mxu0 0.0
    %1630 = vmatpush1.msra.mxu0 %v974
    %1631 = vmatprep.subr.mxu0 0.0
    %1632 = vmatpush1.msra.mxu0 0.0
    %1633 = vmatprep.subr.mxu0 0.0
    %1634 = vmatpush1.msra.mxu0 0.0
    %1635 = vmatprep.subr.mxu0 0.0
    %1636 = vmatpush1.msra.mxu0 0.0
    %1637 = vmatprep.subr.mxu0 0.0
    %1638 = vmatpush1.msra.mxu0 0.0
    %1639 = vmatprep.subr.mxu0 0.0
    %1640 = vmatpush1.msra.mxu0 0.0
    %1641 = vmatprep.subr.mxu0 0.0
    %1642 = vmatpush1.msra.mxu0 0.0
    %1643 = vmatprep.subr.mxu0 0.0
    %1644 = vmatpush1.msra.mxu0 0.0
    %1645 = vmatprep.subr.mxu0 0.0
    %1646 = vmatpush1.msra.mxu0 0.0
    %1647 = vmatprep.subr.mxu0 0.0
    %1648 = vmatpush1.msra.mxu0 0.0
    %1649 = vmatprep.subr.mxu0 0.0
    %1650 = vmatpush1.msra.mxu0 0.0
    %1651 = vmatprep.subr.mxu0 0.0
    %1652 = vmatpush1.msra.mxu0 0.0
    %1653 = vmatprep.subr.mxu0 0.0
    %1654 = vmatpush1.msra.mxu0 0.0
    %1655 = vmatprep.subr.mxu0 0.0
    %1656 = vmatpush1.msra.mxu0 0.0
    %1657 = vmatprep.subr.mxu0 0.0
    %1658 = vmatpush1.msra.mxu0 0.0
    %1659 = vmatprep.subr.mxu0 0.0
    %1660 = vmatpush1.msra.mxu0 0.0
    %1661 = vmatprep.subr.mxu0 0.0
    %1662 = vmatpush1.msra.mxu0 0.0
    %1663 = vmatprep.subr.mxu0 0.0
    %1664 = vmatpush1.msra.mxu0 0.0
    %1665 = vmatprep.subr.mxu0 0.0
    %1666 = vmatpush1.msra.mxu0 0.0
    %1667 = vmatprep.subr.mxu0 0.0
    %1668 = vmatpush1.msra.mxu0 0.0
    %1669 = vmatprep.subr.mxu0 0.0
    %1670 = vmatpush1.msra.mxu0 0.0
    %1671 = vmatprep.subr.mxu0 0.0
    %1672 = vmatpush1.msra.mxu0 0.0
    %1673 = vmatprep.subr.mxu0 0.0
    %1674 = vmatpush1.msra.mxu0 0.0
    %1675 = vmatprep.subr.mxu0 0.0
    %1676 = vmatpush1.msra.mxu0 0.0
    %1677 = vmatprep.subr.mxu0 0.0
    %1678 = vmatpush1.msra.mxu0 0.0
    %1679 = vmatprep.subr.mxu0 0.0
    %1680 = vmatpush1.msra.mxu0 0.0
    %1681 = vmatprep.subr.mxu0 0.0
    %1682 = vmatpush1.msra.mxu0 0.0
    %1683 = vmatprep.subr.mxu0 0.0
    %1684 = vmatpush1.msra.mxu0 0.0
    %1685 = vmatprep.subr.mxu0 0.0
    %1686 = vmatpush1.msra.mxu0 0.0
    %1687 = vmatprep.mubr.f32.mxu0 0.0
    %1688 = vmatmul.mubr.f32.gmra.mrb[0].mxu0 %v1621
    %v1689 = vpop.f32.mrb[0].mxu0
    %v1690 = vadd.f32 0.0, %v1689
    %v1691 = vpop.f32.mrb[0].mxu0
    %1692 = vdwg.mxu0
    %v1694 = vrot.slane %v1690, 2
    %v1695 = vrot.slane %v1690, 3
    %v1696 = vrot.slane %v1690, 4
    %v1700 = vadd.f32 %v1058, %v1694
    %v1701 = vadd.f32 %v1063, %v1695
    %v1702 = vadd.f32 %v1068, %v1696
    %v1703 = vtanh.pop %v1700
    %v1704 = vtanh.pop %v1701
    %v1705 = vtanh.pop %v1702
    %v1709 = vrot.slane %v1703, 6
    %v1710 = vrot.slane %v1704, 5
    %v1711 = vsel %vm283, %v1710, %v1709
    %v1712 = vrot.slane %v1705, 4
    %v1713 = vsel %vm286, %v1712, %v1711
    %v1714 = vsel %vm193, %v1713, 0
    %1716 = vmatprep.subr.mxu0 0.0
    %1717 = vmatpush1.msra.mxu0 %v971
    %1718 = vmatprep.subr.mxu0 0.0
    %1719 = vmatpush1.msra.mxu0 %v972
    %1720 = vmatprep.subr.mxu0 0.0
    %1721 = vmatpush1.msra.mxu0 %v973
    %1722 = vmatprep.subr.mxu0 0.0
    %1723 = vmatpush1.msra.mxu0 %v974
    %1724 = vmatprep.subr.mxu0 0.0
    %1725 = vmatpush1.msra.mxu0 0.0
    %1726 = vmatprep.subr.mxu0 0.0
    %1727 = vmatpush1.msra.mxu0 0.0
    %1728 = vmatprep.subr.mxu0 0.0
    %1729 = vmatpush1.msra.mxu0 0.0
    %1730 = vmatprep.subr.mxu0 0.0
    %1731 = vmatpush1.msra.mxu0 0.0
    %1732 = vmatprep.subr.mxu0 0.0
    %1733 = vmatpush1.msra.mxu0 0.0
    %1734 = vmatprep.subr.mxu0 0.0
    %1735 = vmatpush1.msra.mxu0 0.0
    %1736 = vmatprep.subr.mxu0 0.0
    %1737 = vmatpush1.msra.mxu0 0.0
    %1738 = vmatprep.subr.mxu0 0.0
    %1739 = vmatpush1.msra.mxu0 0.0
    %1740 = vmatprep.subr.mxu0 0.0
    %1741 = vmatpush1.msra.mxu0 0.0
    %1742 = vmatprep.subr.mxu0 0.0
    %1743 = vmatpush1.msra.mxu0 0.0
    %1744 = vmatprep.subr.mxu0 0.0
    %1745 = vmatpush1.msra.mxu0 0.0
    %1746 = vmatprep.subr.mxu0 0.0
    %1747 = vmatpush1.msra.mxu0 0.0
    %1748 = vmatprep.subr.mxu0 0.0
    %1749 = vmatpush1.msra.mxu0 0.0
    %1750 = vmatprep.subr.mxu0 0.0
    %1751 = vmatpush1.msra.mxu0 0.0
    %1752 = vmatprep.subr.mxu0 0.0
    %1753 = vmatpush1.msra.mxu0 0.0
    %1754 = vmatprep.subr.mxu0 0.0
    %1755 = vmatpush1.msra.mxu0 0.0
    %1756 = vmatprep.subr.mxu0 0.0
    %1757 = vmatpush1.msra.mxu0 0.0
    %1758 = vmatprep.subr.mxu0 0.0
    %1759 = vmatpush1.msra.mxu0 0.0
    %1760 = vmatprep.subr.mxu0 0.0
    %1761 = vmatpush1.msra.mxu0 0.0
    %1762 = vmatprep.subr.mxu0 0.0
    %1763 = vmatpush1.msra.mxu0 0.0
    %1764 = vmatprep.subr.mxu0 0.0
    %1765 = vmatpush1.msra.mxu0 0.0
    %1766 = vmatprep.subr.mxu0 0.0
    %1767 = vmatpush1.msra.mxu0 0.0
    %1768 = vmatprep.subr.mxu0 0.0
    %1769 = vmatpush1.msra.mxu0 0.0
    %1770 = vmatprep.subr.mxu0 0.0
    %1771 = vmatpush1.msra.mxu0 0.0
    %1772 = vmatprep.subr.mxu0 0.0
    %1773 = vmatpush1.msra.mxu0 0.0
    %1774 = vmatprep.subr.mxu0 0.0
    %1775 = vmatpush1.msra.mxu0 0.0
    %1776 = vmatprep.subr.mxu0 0.0
    %1777 = vmatpush1.msra.mxu0 0.0
    %1778 = vmatprep.subr.mxu0 0.0
    %1779 = vmatpush1.msra.mxu0 0.0
    %1780 = vmatprep.mubr.f32.mxu0 0.0
    %1781 = vmatmul.mubr.f32.gmra.mrb[0].mxu0 %v1714
    %v1782 = vpop.f32.mrb[0].mxu0
    %v1783 = vadd.f32 0.0, %v1782
    %v1784 = vpop.f32.mrb[0].mxu0
    %1785 = vdwg.mxu0
    %v1787 = vrot.slane %v1783, 1
    %v1788 = vrot.slane %v1783, 2
    %v1789 = vrot.slane %v1783, 3
    %v1793 = vadd.f32 %v1058, %v1787
    %v1794 = vadd.f32 %v1063, %v1788
    %v1795 = vadd.f32 %v1068, %v1789
    %v1796 = vtanh.pop %v1793
    %v1797 = vtanh.pop %v1794
    %v1798 = vtanh.pop %v1795
    %v1802 = vrot.slane %v1797, 7
    %v1803 = vrot.slane %v1798, 6
    %v1804 = vsel %vm283, %v1803, %v1802
    %s1807 = scalar_lea.vmem %s10, 4
    %1808 = vst.msk [vmem:[%s1807 - $0x7] sm:$0x80] %vm935, %v1796
    %1809 = vst.msk [vmem:[%s1807 + $0x1] sm:$0x3] %vm937, %v1804
    %v1810 = vsel %vm939, %v1150, %v1241
    %v1811 = vsel %vm939, %v1151, %v1242
    %v1812 = vsel %vm939, %v1152, %v1243
    %v1813 = vsel %vm943, %v1810, %v1332
    %v1814 = vsel %vm943, %v1811, %v1333
    %v1815 = vsel %vm943, %v1812, %v1334
    %v1816 = vsel %vm947, %v1813, %v1424
    %v1817 = vsel %vm947, %v1814, %v1425
    %v1818 = vsel %vm947, %v1815, %v1426
    %v1819 = vsel %vm951, %v1816, %v1517
    %v1820 = vsel %vm951, %v1817, %v1518
    %v1821 = vsel %vm951, %v1818, %v1519
    %v1822 = vsel %vm955, %v1819, %v1610
    %v1823 = vsel %vm955, %v1820, %v1611
    %v1824 = vsel %vm955, %v1821, %v1612
    %v1825 = vsel %vm959, %v1822, %v1703
    %v1826 = vsel %vm959, %v1823, %v1704
    %v1827 = vsel %vm959, %v1824, %v1705
    %v1828 = vsel %vm963, %v1825, %v1796
    %v1829 = vsel %vm963, %v1826, %v1797
    %v1830 = vsel %vm963, %v1827, %v1798
    %v1831 = vld [vmem:[%s7] sm:$0xff]
    %v1832 = vld [vmem:[%s7 + $0x8] sm:$0xff]
    %v1833 = vld [vmem:[%s7 + $0x10] sm:$0xff]
    %v1834 = vld [vmem:[%s7 + $0x18] sm:$0xff]
    %v1835 = vld [vmem:[#allocation7] sm:$0x1]
    %v1837 = vlaneseq
    %v1838 = vshrl.u32 %v1837, 7
    %v1839 = vsub.s32 0, %v1838
    %v1840 = vrot.slane %v1835, %v1839
    %v1843 = vsel %vm193, %v1828, 0
    %v1846 = vsel %vm193, %v1829, 0
    %v1849 = vsel %vm193, %v1830, 0
    %1851 = vmatprep.subr.mxu0 0.0
    %1852 = vmatpush1.msra.mxu0 %v1831
    %1853 = vmatprep.subr.mxu0 0.0
    %1854 = vmatpush1.msra.mxu0 %v1832
    %1855 = vmatprep.subr.mxu0 0.0
    %1856 = vmatpush1.msra.mxu0 %v1833
    %1857 = vmatprep.subr.mxu0 0.0
    %1858 = vmatpush1.msra.mxu0 %v1834
    %1859 = vmatprep.subr.mxu0 0.0
    %1860 = vmatpush1.msra.mxu0 0.0
    %1861 = vmatprep.subr.mxu0 0.0
    %1862 = vmatpush1.msra.mxu0 0.0
    %1863 = vmatprep.subr.mxu0 0.0
    %1864 = vmatpush1.msra.mxu0 0.0
    %1865 = vmatprep.subr.mxu0 0.0
    %1866 = vmatpush1.msra.mxu0 0.0
    %1867 = vmatprep.subr.mxu0 0.0
    %1868 = vmatpush1.msra.mxu0 0.0
    %1869 = vmatprep.subr.mxu0 0.0
    %1870 = vmatpush1.msra.mxu0 0.0
    %1871 = vmatprep.subr.mxu0 0.0
    %1872 = vmatpush1.msra.mxu0 0.0
    %1873 = vmatprep.subr.mxu0 0.0
    %1874 = vmatpush1.msra.mxu0 0.0
    %1875 = vmatprep.subr.mxu0 0.0
    %1876 = vmatpush1.msra.mxu0 0.0
    %1877 = vmatprep.subr.mxu0 0.0
    %1878 = vmatpush1.msra.mxu0 0.0
    %1879 = vmatprep.subr.mxu0 0.0
    %1880 = vmatpush1.msra.mxu0 0.0
    %1881 = vmatprep.subr.mxu0 0.0
    %1882 = vmatpush1.msra.mxu0 0.0
    %1883 = vmatprep.subr.mxu0 0.0
    %1884 = vmatpush1.msra.mxu0 0.0
    %1885 = vmatprep.subr.mxu0 0.0
    %1886 = vmatpush1.msra.mxu0 0.0
    %1887 = vmatprep.subr.mxu0 0.0
    %1888 = vmatpush1.msra.mxu0 0.0
    %1889 = vmatprep.subr.mxu0 0.0
    %1890 = vmatpush1.msra.mxu0 0.0
    %1891 = vmatprep.subr.mxu0 0.0
    %1892 = vmatpush1.msra.mxu0 0.0
    %1893 = vmatprep.subr.mxu0 0.0
    %1894 = vmatpush1.msra.mxu0 0.0
    %1895 = vmatprep.subr.mxu0 0.0
    %1896 = vmatpush1.msra.mxu0 0.0
    %1897 = vmatprep.subr.mxu0 0.0
    %1898 = vmatpush1.msra.mxu0 0.0
    %1899 = vmatprep.subr.mxu0 0.0
    %1900 = vmatpush1.msra.mxu0 0.0
    %1901 = vmatprep.subr.mxu0 0.0
    %1902 = vmatpush1.msra.mxu0 0.0
    %1903 = vmatprep.subr.mxu0 0.0
    %1904 = vmatpush1.msra.mxu0 0.0
    %1905 = vmatprep.subr.mxu0 0.0
    %1906 = vmatpush1.msra.mxu0 0.0
    %1907 = vmatprep.subr.mxu0 0.0
    %1908 = vmatpush1.msra.mxu0 0.0
    %1909 = vmatprep.subr.mxu0 0.0
    %1910 = vmatpush1.msra.mxu0 0.0
    %1911 = vmatprep.subr.mxu0 0.0
    %1912 = vmatpush1.msra.mxu0 0.0
    %1913 = vmatprep.subr.mxu0 0.0
    %1914 = vmatpush1.msra.mxu0 0.0
    %1915 = vmatprep.mubr.f32.mxu0 0.0
    %1916 = vmatmul.mubr.f32.gmra.mrb[0].mxu0 %v1843
    %v1917 = vpop.f32.mrb[0].mxu0
    %v1918 = vadd.f32 %v1840, %v1917
    %v1919 = vpop.f32.mrb[0].mxu0
    %1920 = vmatprep.mubr.f32.mxu0 0.0
    %1921 = vmatmul.mubr.f32.gmra.mrb[0].mxu0 %v1846
    %v1922 = vpop.f32.mrb[0].mxu0
    %v1923 = vadd.f32 %v1840, %v1922
    %v1924 = vpop.f32.mrb[0].mxu0
    %1925 = vmatprep.mubr.f32.mxu0 0.0
    %1926 = vmatmul.mubr.f32.gmra.mrb[0].mxu0 %v1849
    %v1927 = vpop.f32.mrb[0].mxu0
    %v1928 = vadd.f32 %v1840, %v1927
    %v1929 = vpop.f32.mrb[0].mxu0
    %1930 = vdwg.mxu0
    %1931 = vst.msk [vmem:[%s9] sm:$0xff] %vm103, %v1918
    %1932 = vst.msk [vmem:[%s9 + $0x8] sm:$0xff] %vm103, %v1923
    %1933 = vst.msk [vmem:[%s9 + $0x10] sm:$0xff] %vm103, %v1928
    // Predicated region
    $region54: #{model_forward.1} parent=1 // pred_check
      _
    $region55: #{model_forward.1} parent=1 // pred_check_branch
      %1935 = sbr.rel (0) target = $region57
    $region56: #{model_forward.1} parent=1 // pred_region
      _
    $region57: #{model_forward.1} parent=1 // pred_fallthru
      _
    // Predicated region
    $region58: #{model_forward.1} parent=1 // pred_check
      _
    $region59: #{model_forward.1} parent=1 // pred_check_branch
      %1937 = sbr.rel (0) target = $region61
    $region60: #{model_forward.1} parent=1 // pred_region
      _
    $region61: #{model_forward.1} parent=1 // pred_fallthru
      _
    // Predicated region
    $region62: #{model_forward.1} parent=1 // pred_check
      _
    $region63: #{model_forward.1} parent=1 // pred_check_branch
      %1939 = sbr.rel (0) target = $region65
    $region64: #{model_forward.1} parent=1 // pred_region
      _
    $region65: #{model_forward.1} parent=1 // pred_fallthru
      _
    // Predicated region
    $region66: #{model_forward.1} parent=1 // pred_check
      _
    $region67: #{model_forward.1} parent=1 // pred_check_branch
      %1941 = sbr.rel (0) target = $region69
    $region68: #{model_forward.1} parent=1 // pred_region
      _
    $region69: #{model_forward.1} parent=1 // pred_fallthru
      _
    %1942 = vsyncpa [#allocation3], 1
    %1943 = vsyncpa [#allocation5], 1
    %1944 = vsyncpa [#allocation8], 1

</llo_original>
